<compile_context>
chip_gen: v6e
topology: v6e:2x2x1
jax: 0.10.0
libtpu: 0.0.40
codegen_flags: <defaults>
</compile_context>

<pallas_src>
import functools

import numpy as np
import jax
import jax.numpy as jnp
from jax import lax
from jax.experimental import pallas as pl
from jax.experimental.pallas import tpu as pltpu


# -----------------------------------------------------------------------------
# Kernel 1: duration predictor (the `impl` Sequential)
# -----------------------------------------------------------------------------
def predict_durations(x, params, rows_per_step=8):
    """x: (B, T, Cin) float32 -> pred_duration (B, T) float32."""
    B, T, Din = x.shape
    H, _, K = params["w1"].shape

    # Several batch rows per grid step: amortizes per-step overhead and fills
    # the output slab's sublanes.
    Bb = min(B, rows_per_step)
    B_pad = ((B + Bb - 1) // Bb) * Bb
    if B_pad != B:
        x = jnp.concatenate([x, jnp.zeros((B_pad - B, T, Din), x.dtype)], axis=0)

    # Per-tap weights (k, cin, cout): conv becomes K accumulating matmuls.
    w1s = jnp.transpose(params["w1"], (2, 1, 0))     # (K, Din, H)
    w2s = jnp.transpose(params["w2"], (2, 1, 0))     # (K, H,   H)

    # Pack the 7 per-channel vectors into a single (8, H) block (one DMA, one
    # (8,128)-padded VMEM tile instead of seven).
    vecs = jnp.stack([params["b1"], params["g1"], params["be1"],
                      params["b2"], params["g2"], params["be2"],
                      params["wl"][0],
                      jnp.zeros((H,), jnp.float32)], axis=0)       # (8, H)
    bl = params["bl"].astype(jnp.float32).reshape(1)               # (1,) SMEM

    def kernel(x_ref, w1_ref, w2_ref, vec_ref, bl_ref, out_ref):
        Bb_, T_, Din_ = x_ref.shape
        K_, _, H_ = w1_ref.shape
        P = K_ // 2

        b1 = vec_ref[0:1, :]; g1 = vec_ref[1:2, :]; be1 = vec_ref[2:3, :]
        b2 = vec_ref[3:4, :]; g2 = vec_ref[4:5, :]; be2 = vec_ref[5:6, :]
        wl = vec_ref[6:7, :]
        bl_s = bl_ref[0]

        def layer_norm(h, gamma, beta):
            mu = jnp.mean(h, axis=-1, keepdims=True)
            var = jnp.mean((h - mu) ** 2, axis=-1, keepdims=True)
            return (h - mu) * lax.rsqrt(var + 1e-5) * gamma + beta

        zx = jnp.zeros((P, Din_), jnp.float32)
        zh = jnp.zeros((P, H_), jnp.float32)

        for b in range(Bb_):                          # static unroll, Bb <= 8
            # --- conv1: h = sum_k shift_k(x) @ w1[k], zero-pad in registers --
            xp = jnp.concatenate([zx, x_ref[b], zx], axis=0)       # (T+2P, Din)
            h = jnp.dot(xp[0:T_, :], w1_ref[0],
                        preferred_element_type=jnp.float32)
            for k in range(1, K_):
                h = h + jnp.dot(xp[k:k + T_, :], w1_ref[k],
                                preferred_element_type=jnp.float32)
            h = jnp.maximum(layer_norm(h + b1, g1, be1), 0.0)
            # Dropout(p=0.1) -> identity in eval mode.

            # --- conv2: same tap-accumulation on the hidden activations ------
            hp = jnp.concatenate([zh, h, zh], axis=0)              # (T+2P, H)
            h2 = jnp.dot(hp[0:T_, :], w2_ref[0],
                         preferred_element_type=jnp.float32)
            for k in range(1, K_):
                h2 = h2 + jnp.dot(hp[k:k + T_, :], w2_ref[k],
                                  preferred_element_type=jnp.float32)
            h2 = jnp.maximum(layer_norm(h2 + b2, g2, be2), 0.0)

            # --- Linear(H, 1): VPU multiply + lane reduce, store (T,) row ----
            out_ref[b] = jnp.sum(h2 * wl, axis=-1) + bl_s

    grid = (B_pad // Bb,)
    out = pl.pallas_call(
        kernel,
        out_shape=jax.ShapeDtypeStruct((B_pad, T), jnp.float32),
        grid=grid,
        in_specs=[
            pl.BlockSpec((Bb, T, Din), lambda g: (g, 0, 0)),
            pl.BlockSpec((K, Din, H), lambda g: (0, 0, 0)),
            pl.BlockSpec((K, H, H), lambda g: (0, 0, 0)),
            pl.BlockSpec((8, H), lambda g: (0, 0)),
            pl.BlockSpec(memory_space=pltpu.MemorySpace.SMEM),
        ],
        out_specs=pl.BlockSpec((Bb, T), lambda g: (g, 0)),
        compiler_params=pltpu.CompilerParams(
            dimension_semantics=("parallel",)),
    )(x, w1s, w2s, vecs, bl)
    return out[:B]


# -----------------------------------------------------------------------------
# Kernel 2: alignment build + expansion, alignment in (L, T) layout
# -----------------------------------------------------------------------------
def _expand_kernel(x_ref, s_ref, e_ref, o_ref):
    TL = o_ref.shape[1]
    T = x_ref.shape[1]
    l0 = pl.program_id(1) * TL

    # Alignment slab (TL, T): rows are output positions; contraction dim T
    # sits on lanes of the LHS.
    l_idx = lax.broadcasted_iota(jnp.int32, (TL, T), 0) + l0
    starts = s_ref[0]              # (1, T) int32
    ends = e_ref[0]                # (1, T) int32
    align = jnp.logical_and(l_idx >= starts, l_idx < ends).astype(jnp.float32)

    # TODO(synk): for small T a scalar-prefetched row gather would avoid the
    # O(L*T*D) one-hot matmul; the matmul is kept as the robust MXU form.
    o_ref[0] = jnp.dot(align, x_ref[0], preferred_element_type=jnp.float32)


@functools.partial(jax.jit, static_argnames=("length_padded", "tile_l"))
def expand_by_duration(x, starts, ends, *, length_padded, tile_l):
    """x: (B,T,D); starts/ends: (B,T) int32 -> (B, length_padded, D)."""
    B, T, D = x.shape
    starts3 = starts[:, None, :].astype(jnp.int32)
    ends3 = ends[:, None, :].astype(jnp.int32)
    return pl.pallas_call(
        _expand_kernel,
        out_shape=jax.ShapeDtypeStruct((B, length_padded, D), jnp.float32),
        grid=(B, length_padded // tile_l),
        in_specs=[
            pl.BlockSpec((1, T, D), lambda b, l: (b, 0, 0)),
            pl.BlockSpec((1, 1, T), lambda b, l: (b, 0, 0)),
            pl.BlockSpec((1, 1, T), lambda b, l: (b, 0, 0)),
        ],
        out_specs=pl.BlockSpec((1, tile_l, D), lambda b, l: (b, l, 0)),
        compiler_params=pltpu.CompilerParams(
            dimension_semantics=("parallel", "parallel"),
            vmem_limit_bytes=32 * 1024 * 1024),
    )(x, starts3, ends3)


# -----------------------------------------------------------------------------
# Full forward (glue in plain JAX; single host scalar sync for L)
# -----------------------------------------------------------------------------
def _round_up(v, m):
    return ((v + m - 1) // m) * m


def _choose_l_tiling(length, T, D):
    """Largest lane-aligned L tile within a conservative per-step VMEM budget
    (portable to v7x's 64 MiB VMEM and v5e's 16 MiB scoped default, which we
    raise explicitly to 32 MiB in the pallas_call)."""
    l_pad = max(128, _round_up(length, 128))
    budget = 16 * 1024 * 1024

    def step_bytes(tl):
        return 4 * (tl * T          # (tile_l, T) alignment slab
                    + 2 * tl * D    # double-buffered output block
                    + 2 * T * D     # double-buffered x block
                    + 4 * T)        # starts / ends blocks

    if l_pad <= 2048 and step_bytes(l_pad) <= budget:
        tile_l = l_pad
    else:
        tile_l = 128
        for cand in (2048, 1024, 512, 256, 128):
            if step_bytes(cand) <= budget:
                tile_l = cand
                break
        l_pad = _round_up(l_pad, tile_l)
    return l_pad, tile_l


@jax.jit
def _predict_stage(x, params, true_duration):
    pred = predict_durations(x, params)
    use = jnp.exp(pred) if true_duration is None else true_duration
    dur = jnp.rint(use).astype(jnp.int32)            # half-to-even == torch.round
    starts = jnp.cumsum(dur, axis=-1) - dur          # exclusive cumsum
    ends = starts + dur
    return pred, starts, ends, jnp.max(ends[:, -1])


def length_regulator_forward(x, params, true_duration=None):
    pred, starts, ends, max_len = _predict_stage(x, params, true_duration)
    # TODO(synk): L = max_b(sum_t duration) is data-dependent; only this one
    # scalar crosses device->host, then L is bucketed to a multiple of 128.
    length = max(int(jax.device_get(max_len)), 1)
    B, T, D = x.shape
    l_pad, tile_l = _choose_l_tiling(length, T, D)
    expanded = expand_by_duration(x, starts, ends,
                                  length_padded=l_pad, tile_l=tile_l)
    return expanded[:, :length, :], pred


# -----------------------------------------------------------------------------
# Pure-JAX/numpy reference (mirrors the PyTorch module) for validation
# -----------------------------------------------------------------------------
def reference_forward(x, params, true_duration):
    def conv1d(h, w, b):  # h (B,T,Cin), w (Cout,Cin,K) torch layout
        p = w.shape[-1] // 2
        y = lax.conv_general_dilated(jnp.transpose(h, (0, 2, 1)), w,
                                     window_strides=(1,), padding=[(p, p)],
                                     dimension_numbers=("NCH", "OIH", "NCH"))
        return jnp.transpose(y, (0, 2, 1)) + b

    def ln(h, g, be):
        mu = jnp.mean(h, -1, keepdims=True)
        var = jnp.mean((h - mu) ** 2, -1, keepdims=True)
        return (h - mu) / jnp.sqrt(var + 1e-5) * g + be

    h = jnp.maximum(ln(conv1d(x, params["w1"], params["b1"]),
                       params["g1"], params["be1"]), 0.0)
    h = jnp.maximum(ln(conv1d(h, params["w2"], params["b2"]),
                       params["g2"], params["be2"]), 0.0)
    pred = (h @ params["wl"].T + params["bl"])[..., 0]

    use = true_duration if true_duration is not None else jnp.exp(pred)
    dur = np.asarray(jnp.rint(use)).astype(np.int32)
    length = int(dur.sum(-1).max())
    B, T, _ = x.shape
    align = np.zeros((B, T, length), np.float32)
    for i in range(B):
        c = 0
        for j in range(T):
            align[i, j, c:c + dur[i, j]] = 1.0
            c += dur[i, j]
    xe = np.transpose(np.asarray(x), (0, 2, 1)) @ align
    return np.transpose(xe, (0, 2, 1)), np.asarray(pred)


# -----------------------------------------------------------------------------
if __name__ == "__main__":
    B, T, INPUT_SIZE, HIDDEN_SIZE, KERNEL = 2, 8, 16, 32, 3

    key = jax.random.PRNGKey(0)
    kx, kd, k1, k2, k3, k4, k5, k6 = jax.random.split(key, 8)

    x = jax.random.normal(kx, (B, T, INPUT_SIZE), dtype=jnp.float32)
    true_duration = jax.random.randint(kd, (B, T), 1, 4).astype(jnp.float32)

    # Deterministic synthetic parameters (torch layouts).
    params = {
        "w1": 0.1 * jax.random.normal(k1, (HIDDEN_SIZE, INPUT_SIZE, KERNEL), jnp.float32),
        "b1": 0.01 * jax.random.normal(k2, (HIDDEN_SIZE,), jnp.float32),
        "g1": jnp.ones((HIDDEN_SIZE,), jnp.float32),
        "be1": jnp.zeros((HIDDEN_SIZE,), jnp.float32),
        "w2": 0.1 * jax.random.normal(k3, (HIDDEN_SIZE, HIDDEN_SIZE, KERNEL), jnp.float32),
        "b2": 0.01 * jax.random.normal(k4, (HIDDEN_SIZE,), jnp.float32),
        "g2": jnp.ones((HIDDEN_SIZE,), jnp.float32),
        "be2": jnp.zeros((HIDDEN_SIZE,), jnp.float32),
        "wl": 0.1 * jax.random.normal(k5, (1, HIDDEN_SIZE), jnp.float32),
        "bl": 0.01 * jax.random.normal(k6, (1,), jnp.float32),
    }

    expanded, pred = length_regulator_forward(x, params, true_duration)
    expanded = jax.block_until_ready(expanded)
    pred = jax.block_until_ready(pred)

    ref_expanded, ref_pred = reference_forward(x, params, true_duration)

    assert pred.shape == (B, T)
    assert expanded.shape == ref_expanded.shape
    np.testing.assert_allclose(np.asarray(pred), ref_pred, rtol=1e-2, atol=1e-2)
    np.testing.assert_allclose(np.asarray(expanded), ref_expanded, rtol=1e-4, atol=1e-4)

    print("KERNEL_OK")
</pallas_src>

<mosaic_0001>
module attributes {stable_mosaic.version = 11 : i64} {
  func.func @kernel(%arg0: i32, %arg1: memref<2x8x16xf32, #tpu.memory_space<vmem>>, %arg2: memref<3x16x32xf32, #tpu.memory_space<vmem>>, %arg3: memref<3x32x32xf32, #tpu.memory_space<vmem>>, %arg4: memref<8x32xf32, #tpu.memory_space<vmem>>, %arg5: memref<1xf32, #tpu.memory_space<smem>>, %arg6: memref<2x8xf32, #tpu.memory_space<vmem>>) attributes {dimension_semantics = [#tpu.dimension_semantics<parallel>], iteration_bounds = array<i64: 1>, scalar_prefetch = 0 : i64, scratch_operands = 0 : i64, tpu.core_type = #tpu.core_type<tc>, window_params = [{transform_indices = @transform_0, window_bounds = array<i64: 2, 8, 16>}, {pipeline_mode = #tpu.pipeline_mode<synchronous>, transform_indices = @transform_1, window_bounds = array<i64: 3, 16, 32>}, {pipeline_mode = #tpu.pipeline_mode<synchronous>, transform_indices = @transform_2, window_bounds = array<i64: 3, 32, 32>}, {pipeline_mode = #tpu.pipeline_mode<synchronous>, transform_indices = @transform_3, window_bounds = array<i64: 8, 32>}, {transform_indices = @transform_4, window_bounds = array<i64: 1>}, {transform_indices = @transform_5, window_bounds = array<i64: 2, 8>}]} {
    %c0 = arith.constant 0 : index
    %c0_0 = arith.constant 0 : index
    %0 = vector.load %arg4[%c0, %c0_0] : memref<8x32xf32, #tpu.memory_space<vmem>>, vector<1x32xf32>
    %c1 = arith.constant 1 : index
    %c0_1 = arith.constant 0 : index
    %1 = vector.load %arg4[%c1, %c0_1] : memref<8x32xf32, #tpu.memory_space<vmem>>, vector<1x32xf32>
    %c2 = arith.constant 2 : index
    %c0_2 = arith.constant 0 : index
    %2 = vector.load %arg4[%c2, %c0_2] : memref<8x32xf32, #tpu.memory_space<vmem>>, vector<1x32xf32>
    %c3 = arith.constant 3 : index
    %c0_3 = arith.constant 0 : index
    %3 = vector.load %arg4[%c3, %c0_3] : memref<8x32xf32, #tpu.memory_space<vmem>>, vector<1x32xf32>
    %c4 = arith.constant 4 : index
    %c0_4 = arith.constant 0 : index
    %4 = vector.load %arg4[%c4, %c0_4] : memref<8x32xf32, #tpu.memory_space<vmem>>, vector<1x32xf32>
    %c5 = arith.constant 5 : index
    %c0_5 = arith.constant 0 : index
    %5 = vector.load %arg4[%c5, %c0_5] : memref<8x32xf32, #tpu.memory_space<vmem>>, vector<1x32xf32>
    %c6 = arith.constant 6 : index
    %c0_6 = arith.constant 0 : index
    %6 = vector.load %arg4[%c6, %c0_6] : memref<8x32xf32, #tpu.memory_space<vmem>>, vector<1x32xf32>
    %c0_7 = arith.constant 0 : index
    %7 = memref.load %arg5[%c0_7] : memref<1xf32, #tpu.memory_space<smem>>
    %cst = arith.constant 0.000000e+00 : f32
    %8 = vector.broadcast %cst : f32 to vector<1x16xf32>
    %cst_8 = arith.constant 0.000000e+00 : f32
    %9 = vector.broadcast %cst_8 : f32 to vector<1x32xf32>
    %c0_9 = arith.constant 0 : index
    %c0_10 = arith.constant 0 : index
    %c0_11 = arith.constant 0 : index
    %10 = vector.load %arg1[%c0_9, %c0_10, %c0_11] : memref<2x8x16xf32, #tpu.memory_space<vmem>>, vector<1x8x16xf32>
    %11 = vector.shape_cast %10 : vector<1x8x16xf32> to vector<8x16xf32>
    %12 = tpu.concatenate %8, %11, %8 in 0 : vector<1x16xf32>, vector<8x16xf32>, vector<1x16xf32> -> vector<10x16xf32>
    %13 = vector.extract_strided_slice %12 {offsets = [0, 0], sizes = [8, 16], strides = [1, 1]} : vector<10x16xf32> to vector<8x16xf32>
    %c0_12 = arith.constant 0 : index
    %c0_13 = arith.constant 0 : index
    %c0_14 = arith.constant 0 : index
    %14 = vector.load %arg2[%c0_12, %c0_13, %c0_14] : memref<3x16x32xf32, #tpu.memory_space<vmem>>, vector<1x16x32xf32>
    %15 = vector.shape_cast %14 : vector<1x16x32xf32> to vector<16x32xf32>
    %cst_15 = arith.constant dense<0.000000e+00> : vector<8x32xf32>
    %16 = tpu.matmul %13, %15, %cst_15 {dimension_numbers = #tpu.dot_dimension_numbers<[1], [0], [0], [1], [0, 0, 1, 1], [], []>} : vector<8x16xf32>, vector<16x32xf32>, vector<8x32xf32> -> vector<8x32xf32>
    %17 = vector.extract_strided_slice %12 {offsets = [1, 0], sizes = [8, 16], strides = [1, 1]} : vector<10x16xf32> to vector<8x16xf32>
    %c1_16 = arith.constant 1 : index
    %c0_17 = arith.constant 0 : index
    %c0_18 = arith.constant 0 : index
    %18 = vector.load %arg2[%c1_16, %c0_17, %c0_18] : memref<3x16x32xf32, #tpu.memory_space<vmem>>, vector<1x16x32xf32>
    %19 = vector.shape_cast %18 : vector<1x16x32xf32> to vector<16x32xf32>
    %cst_19 = arith.constant dense<0.000000e+00> : vector<8x32xf32>
    %20 = tpu.matmul %17, %19, %cst_19 {dimension_numbers = #tpu.dot_dimension_numbers<[1], [0], [0], [1], [0, 0, 1, 1], [], []>} : vector<8x16xf32>, vector<16x32xf32>, vector<8x32xf32> -> vector<8x32xf32>
    %21 = arith.addf %16, %20 : vector<8x32xf32>
    %22 = vector.extract_strided_slice %12 {offsets = [2, 0], sizes = [8, 16], strides = [1, 1]} : vector<10x16xf32> to vector<8x16xf32>
    %c2_20 = arith.constant 2 : index
    %c0_21 = arith.constant 0 : index
    %c0_22 = arith.constant 0 : index
    %23 = vector.load %arg2[%c2_20, %c0_21, %c0_22] : memref<3x16x32xf32, #tpu.memory_space<vmem>>, vector<1x16x32xf32>
    %24 = vector.shape_cast %23 : vector<1x16x32xf32> to vector<16x32xf32>
    %cst_23 = arith.constant dense<0.000000e+00> : vector<8x32xf32>
    %25 = tpu.matmul %22, %24, %cst_23 {dimension_numbers = #tpu.dot_dimension_numbers<[1], [0], [0], [1], [0, 0, 1, 1], [], []>} : vector<8x16xf32>, vector<16x32xf32>, vector<8x32xf32> -> vector<8x32xf32>
    %26 = arith.addf %21, %25 : vector<8x32xf32>
    %27 = vector.broadcast %0 : vector<1x32xf32> to vector<8x32xf32>
    %28 = arith.addf %26, %27 : vector<8x32xf32>
    %cst_24 = arith.constant dense<0.000000e+00> : vector<8xf32>
    %29 = vector.multi_reduction <add>, %28, %cst_24 [1] : vector<8x32xf32> to vector<8xf32>
    %30 = vector.shape_cast %29 : vector<8xf32> to vector<8x1xf32>
    %cst_25 = arith.constant 3.200000e+01 : f32
    %31 = vector.broadcast %cst_25 : f32 to vector<8x1xf32>
    %32 = arith.divf %30, %31 : vector<8x1xf32>
    %33 = vector.broadcast %32 : vector<8x1xf32> to vector<8x32xf32>
    %34 = arith.subf %28, %33 : vector<8x32xf32>
    %35 = arith.mulf %34, %34 : vector<8x32xf32>
    %cst_26 = arith.constant dense<0.000000e+00> : vector<8xf32>
    %36 = vector.multi_reduction <add>, %35, %cst_26 [1] : vector<8x32xf32> to vector<8xf32>
    %37 = vector.shape_cast %36 : vector<8xf32> to vector<8x1xf32>
    %cst_27 = arith.constant 3.200000e+01 : f32
    %38 = vector.broadcast %cst_27 : f32 to vector<8x1xf32>
    %39 = arith.divf %37, %38 : vector<8x1xf32>
    %40 = vector.broadcast %32 : vector<8x1xf32> to vector<8x32xf32>
    %41 = arith.subf %28, %40 : vector<8x32xf32>
    %cst_28 = arith.constant 9.99999974E-6 : f32
    %42 = vector.broadcast %cst_28 : f32 to vector<8x1xf32>
    %43 = arith.addf %39, %42 : vector<8x1xf32>
    %44 = math.rsqrt %43 : vector<8x1xf32>
    %45 = vector.broadcast %44 : vector<8x1xf32> to vector<8x32xf32>
    %46 = arith.mulf %41, %45 : vector<8x32xf32>
    %47 = vector.broadcast %1 : vector<1x32xf32> to vector<8x32xf32>
    %48 = arith.mulf %46, %47 : vector<8x32xf32>
    %49 = vector.broadcast %2 : vector<1x32xf32> to vector<8x32xf32>
    %50 = arith.addf %48, %49 : vector<8x32xf32>
    %cst_29 = arith.constant 0.000000e+00 : f32
    %51 = vector.broadcast %cst_29 : f32 to vector<8x32xf32>
    %52 = arith.maximumf %50, %51 : vector<8x32xf32>
    %53 = tpu.concatenate %9, %52, %9 in 0 : vector<1x32xf32>, vector<8x32xf32>, vector<1x32xf32> -> vector<10x32xf32>
    %54 = vector.extract_strided_slice %53 {offsets = [0, 0], sizes = [8, 32], strides = [1, 1]} : vector<10x32xf32> to vector<8x32xf32>
    %c0_30 = arith.constant 0 : index
    %c0_31 = arith.constant 0 : index
    %c0_32 = arith.constant 0 : index
    %55 = vector.load %arg3[%c0_30, %c0_31, %c0_32] : memref<3x32x32xf32, #tpu.memory_space<vmem>>, vector<1x32x32xf32>
    %56 = vector.shape_cast %55 : vector<1x32x32xf32> to vector<32x32xf32>
    %cst_33 = arith.constant dense<0.000000e+00> : vector<8x32xf32>
    %57 = tpu.matmul %54, %56, %cst_33 {dimension_numbers = #tpu.dot_dimension_numbers<[1], [0], [0], [1], [0, 0, 1, 1], [], []>} : vector<8x32xf32>, vector<32x32xf32>, vector<8x32xf32> -> vector<8x32xf32>
    %58 = vector.extract_strided_slice %53 {offsets = [1, 0], sizes = [8, 32], strides = [1, 1]} : vector<10x32xf32> to vector<8x32xf32>
    %c1_34 = arith.constant 1 : index
    %c0_35 = arith.constant 0 : index
    %c0_36 = arith.constant 0 : index
    %59 = vector.load %arg3[%c1_34, %c0_35, %c0_36] : memref<3x32x32xf32, #tpu.memory_space<vmem>>, vector<1x32x32xf32>
    %60 = vector.shape_cast %59 : vector<1x32x32xf32> to vector<32x32xf32>
    %cst_37 = arith.constant dense<0.000000e+00> : vector<8x32xf32>
    %61 = tpu.matmul %58, %60, %cst_37 {dimension_numbers = #tpu.dot_dimension_numbers<[1], [0], [0], [1], [0, 0, 1, 1], [], []>} : vector<8x32xf32>, vector<32x32xf32>, vector<8x32xf32> -> vector<8x32xf32>
    %62 = arith.addf %57, %61 : vector<8x32xf32>
    %63 = vector.extract_strided_slice %53 {offsets = [2, 0], sizes = [8, 32], strides = [1, 1]} : vector<10x32xf32> to vector<8x32xf32>
    %c2_38 = arith.constant 2 : index
    %c0_39 = arith.constant 0 : index
    %c0_40 = arith.constant 0 : index
    %64 = vector.load %arg3[%c2_38, %c0_39, %c0_40] : memref<3x32x32xf32, #tpu.memory_space<vmem>>, vector<1x32x32xf32>
    %65 = vector.shape_cast %64 : vector<1x32x32xf32> to vector<32x32xf32>
    %cst_41 = arith.constant dense<0.000000e+00> : vector<8x32xf32>
    %66 = tpu.matmul %63, %65, %cst_41 {dimension_numbers = #tpu.dot_dimension_numbers<[1], [0], [0], [1], [0, 0, 1, 1], [], []>} : vector<8x32xf32>, vector<32x32xf32>, vector<8x32xf32> -> vector<8x32xf32>
    %67 = arith.addf %62, %66 : vector<8x32xf32>
    %68 = vector.broadcast %3 : vector<1x32xf32> to vector<8x32xf32>
    %69 = arith.addf %67, %68 : vector<8x32xf32>
    %cst_42 = arith.constant dense<0.000000e+00> : vector<8xf32>
    %70 = vector.multi_reduction <add>, %69, %cst_42 [1] : vector<8x32xf32> to vector<8xf32>
    %71 = vector.shape_cast %70 : vector<8xf32> to vector<8x1xf32>
    %cst_43 = arith.constant 3.200000e+01 : f32
    %72 = vector.broadcast %cst_43 : f32 to vector<8x1xf32>
    %73 = arith.divf %71, %72 : vector<8x1xf32>
    %74 = vector.broadcast %73 : vector<8x1xf32> to vector<8x32xf32>
    %75 = arith.subf %69, %74 : vector<8x32xf32>
    %76 = arith.mulf %75, %75 : vector<8x32xf32>
    %cst_44 = arith.constant dense<0.000000e+00> : vector<8xf32>
    %77 = vector.multi_reduction <add>, %76, %cst_44 [1] : vector<8x32xf32> to vector<8xf32>
    %78 = vector.shape_cast %77 : vector<8xf32> to vector<8x1xf32>
    %cst_45 = arith.constant 3.200000e+01 : f32
    %79 = vector.broadcast %cst_45 : f32 to vector<8x1xf32>
    %80 = arith.divf %78, %79 : vector<8x1xf32>
    %81 = vector.broadcast %73 : vector<8x1xf32> to vector<8x32xf32>
    %82 = arith.subf %69, %81 : vector<8x32xf32>
    %cst_46 = arith.constant 9.99999974E-6 : f32
    %83 = vector.broadcast %cst_46 : f32 to vector<8x1xf32>
    %84 = arith.addf %80, %83 : vector<8x1xf32>
    %85 = math.rsqrt %84 : vector<8x1xf32>
    %86 = vector.broadcast %85 : vector<8x1xf32> to vector<8x32xf32>
    %87 = arith.mulf %82, %86 : vector<8x32xf32>
    %88 = vector.broadcast %4 : vector<1x32xf32> to vector<8x32xf32>
    %89 = arith.mulf %87, %88 : vector<8x32xf32>
    %90 = vector.broadcast %5 : vector<1x32xf32> to vector<8x32xf32>
    %91 = arith.addf %89, %90 : vector<8x32xf32>
    %cst_47 = arith.constant 0.000000e+00 : f32
    %92 = vector.broadcast %cst_47 : f32 to vector<8x32xf32>
    %93 = arith.maximumf %91, %92 : vector<8x32xf32>
    %94 = vector.broadcast %6 : vector<1x32xf32> to vector<8x32xf32>
    %95 = arith.mulf %93, %94 : vector<8x32xf32>
    %cst_48 = arith.constant dense<0.000000e+00> : vector<8xf32>
    %96 = vector.multi_reduction <add>, %95, %cst_48 [1] : vector<8x32xf32> to vector<8xf32>
    %97 = vector.broadcast %7 : f32 to vector<8xf32>
    %98 = arith.addf %96, %97 : vector<8xf32>
    %c0_49 = arith.constant 0 : index
    %c0_50 = arith.constant 0 : index
    %99 = vector.load %arg6[%c0_49, %c0_50] : memref<2x8xf32, #tpu.memory_space<vmem>>, vector<1x8xf32>
    %100 = vector.shape_cast %99 : vector<1x8xf32> to vector<8xf32>
    %101 = vector.shape_cast %98 : vector<8xf32> to vector<1x8xf32>
    tpu.vector_store %arg6[%c0_49, %c0_50], %101 {strides = array<i32>} : memref<2x8xf32, #tpu.memory_space<vmem>>, vector<1x8xf32>,
    %c1_51 = arith.constant 1 : index
    %c0_52 = arith.constant 0 : index
    %c0_53 = arith.constant 0 : index
    %102 = vector.load %arg1[%c1_51, %c0_52, %c0_53] : memref<2x8x16xf32, #tpu.memory_space<vmem>>, vector<1x8x16xf32>
    %103 = vector.shape_cast %102 : vector<1x8x16xf32> to vector<8x16xf32>
    %104 = tpu.concatenate %8, %103, %8 in 0 : vector<1x16xf32>, vector<8x16xf32>, vector<1x16xf32> -> vector<10x16xf32>
    %105 = vector.extract_strided_slice %104 {offsets = [0, 0], sizes = [8, 16], strides = [1, 1]} : vector<10x16xf32> to vector<8x16xf32>
    %c0_54 = arith.constant 0 : index
    %c0_55 = arith.constant 0 : index
    %c0_56 = arith.constant 0 : index
    %106 = vector.load %arg2[%c0_54, %c0_55, %c0_56] : memref<3x16x32xf32, #tpu.memory_space<vmem>>, vector<1x16x32xf32>
    %107 = vector.shape_cast %106 : vector<1x16x32xf32> to vector<16x32xf32>
    %cst_57 = arith.constant dense<0.000000e+00> : vector<8x32xf32>
    %108 = tpu.matmul %105, %107, %cst_57 {dimension_numbers = #tpu.dot_dimension_numbers<[1], [0], [0], [1], [0, 0, 1, 1], [], []>} : vector<8x16xf32>, vector<16x32xf32>, vector<8x32xf32> -> vector<8x32xf32>
    %109 = vector.extract_strided_slice %104 {offsets = [1, 0], sizes = [8, 16], strides = [1, 1]} : vector<10x16xf32> to vector<8x16xf32>
    %c1_58 = arith.constant 1 : index
    %c0_59 = arith.constant 0 : index
    %c0_60 = arith.constant 0 : index
    %110 = vector.load %arg2[%c1_58, %c0_59, %c0_60] : memref<3x16x32xf32, #tpu.memory_space<vmem>>, vector<1x16x32xf32>
    %111 = vector.shape_cast %110 : vector<1x16x32xf32> to vector<16x32xf32>
    %cst_61 = arith.constant dense<0.000000e+00> : vector<8x32xf32>
    %112 = tpu.matmul %109, %111, %cst_61 {dimension_numbers = #tpu.dot_dimension_numbers<[1], [0], [0], [1], [0, 0, 1, 1], [], []>} : vector<8x16xf32>, vector<16x32xf32>, vector<8x32xf32> -> vector<8x32xf32>
    %113 = arith.addf %108, %112 : vector<8x32xf32>
    %114 = vector.extract_strided_slice %104 {offsets = [2, 0], sizes = [8, 16], strides = [1, 1]} : vector<10x16xf32> to vector<8x16xf32>
    %c2_62 = arith.constant 2 : index
    %c0_63 = arith.constant 0 : index
    %c0_64 = arith.constant 0 : index
    %115 = vector.load %arg2[%c2_62, %c0_63, %c0_64] : memref<3x16x32xf32, #tpu.memory_space<vmem>>, vector<1x16x32xf32>
    %116 = vector.shape_cast %115 : vector<1x16x32xf32> to vector<16x32xf32>
    %cst_65 = arith.constant dense<0.000000e+00> : vector<8x32xf32>
    %117 = tpu.matmul %114, %116, %cst_65 {dimension_numbers = #tpu.dot_dimension_numbers<[1], [0], [0], [1], [0, 0, 1, 1], [], []>} : vector<8x16xf32>, vector<16x32xf32>, vector<8x32xf32> -> vector<8x32xf32>
    %118 = arith.addf %113, %117 : vector<8x32xf32>
    %119 = vector.broadcast %0 : vector<1x32xf32> to vector<8x32xf32>
    %120 = arith.addf %118, %119 : vector<8x32xf32>
    %cst_66 = arith.constant dense<0.000000e+00> : vector<8xf32>
    %121 = vector.multi_reduction <add>, %120, %cst_66 [1] : vector<8x32xf32> to vector<8xf32>
    %122 = vector.shape_cast %121 : vector<8xf32> to vector<8x1xf32>
    %cst_67 = arith.constant 3.200000e+01 : f32
    %123 = vector.broadcast %cst_67 : f32 to vector<8x1xf32>
    %124 = arith.divf %122, %123 : vector<8x1xf32>
    %125 = vector.broadcast %124 : vector<8x1xf32> to vector<8x32xf32>
    %126 = arith.subf %120, %125 : vector<8x32xf32>
    %127 = arith.mulf %126, %126 : vector<8x32xf32>
    %cst_68 = arith.constant dense<0.000000e+00> : vector<8xf32>
    %128 = vector.multi_reduction <add>, %127, %cst_68 [1] : vector<8x32xf32> to vector<8xf32>
    %129 = vector.shape_cast %128 : vector<8xf32> to vector<8x1xf32>
    %cst_69 = arith.constant 3.200000e+01 : f32
    %130 = vector.broadcast %cst_69 : f32 to vector<8x1xf32>
    %131 = arith.divf %129, %130 : vector<8x1xf32>
    %132 = vector.broadcast %124 : vector<8x1xf32> to vector<8x32xf32>
    %133 = arith.subf %120, %132 : vector<8x32xf32>
    %cst_70 = arith.constant 9.99999974E-6 : f32
    %134 = vector.broadcast %cst_70 : f32 to vector<8x1xf32>
    %135 = arith.addf %131, %134 : vector<8x1xf32>
    %136 = math.rsqrt %135 : vector<8x1xf32>
    %137 = vector.broadcast %136 : vector<8x1xf32> to vector<8x32xf32>
    %138 = arith.mulf %133, %137 : vector<8x32xf32>
    %139 = vector.broadcast %1 : vector<1x32xf32> to vector<8x32xf32>
    %140 = arith.mulf %138, %139 : vector<8x32xf32>
    %141 = vector.broadcast %2 : vector<1x32xf32> to vector<8x32xf32>
    %142 = arith.addf %140, %141 : vector<8x32xf32>
    %cst_71 = arith.constant 0.000000e+00 : f32
    %143 = vector.broadcast %cst_71 : f32 to vector<8x32xf32>
    %144 = arith.maximumf %142, %143 : vector<8x32xf32>
    %145 = tpu.concatenate %9, %144, %9 in 0 : vector<1x32xf32>, vector<8x32xf32>, vector<1x32xf32> -> vector<10x32xf32>
    %146 = vector.extract_strided_slice %145 {offsets = [0, 0], sizes = [8, 32], strides = [1, 1]} : vector<10x32xf32> to vector<8x32xf32>
    %c0_72 = arith.constant 0 : index
    %c0_73 = arith.constant 0 : index
    %c0_74 = arith.constant 0 : index
    %147 = vector.load %arg3[%c0_72, %c0_73, %c0_74] : memref<3x32x32xf32, #tpu.memory_space<vmem>>, vector<1x32x32xf32>
    %148 = vector.shape_cast %147 : vector<1x32x32xf32> to vector<32x32xf32>
    %cst_75 = arith.constant dense<0.000000e+00> : vector<8x32xf32>
    %149 = tpu.matmul %146, %148, %cst_75 {dimension_numbers = #tpu.dot_dimension_numbers<[1], [0], [0], [1], [0, 0, 1, 1], [], []>} : vector<8x32xf32>, vector<32x32xf32>, vector<8x32xf32> -> vector<8x32xf32>
    %150 = vector.extract_strided_slice %145 {offsets = [1, 0], sizes = [8, 32], strides = [1, 1]} : vector<10x32xf32> to vector<8x32xf32>
    %c1_76 = arith.constant 1 : index
    %c0_77 = arith.constant 0 : index
    %c0_78 = arith.constant 0 : index
    %151 = vector.load %arg3[%c1_76, %c0_77, %c0_78] : memref<3x32x32xf32, #tpu.memory_space<vmem>>, vector<1x32x32xf32>
    %152 = vector.shape_cast %151 : vector<1x32x32xf32> to vector<32x32xf32>
    %cst_79 = arith.constant dense<0.000000e+00> : vector<8x32xf32>
    %153 = tpu.matmul %150, %152, %cst_79 {dimension_numbers = #tpu.dot_dimension_numbers<[1], [0], [0], [1], [0, 0, 1, 1], [], []>} : vector<8x32xf32>, vector<32x32xf32>, vector<8x32xf32> -> vector<8x32xf32>
    %154 = arith.addf %149, %153 : vector<8x32xf32>
    %155 = vector.extract_strided_slice %145 {offsets = [2, 0], sizes = [8, 32], strides = [1, 1]} : vector<10x32xf32> to vector<8x32xf32>
    %c2_80 = arith.constant 2 : index
    %c0_81 = arith.constant 0 : index
    %c0_82 = arith.constant 0 : index
    %156 = vector.load %arg3[%c2_80, %c0_81, %c0_82] : memref<3x32x32xf32, #tpu.memory_space<vmem>>, vector<1x32x32xf32>
    %157 = vector.shape_cast %156 : vector<1x32x32xf32> to vector<32x32xf32>
    %cst_83 = arith.constant dense<0.000000e+00> : vector<8x32xf32>
    %158 = tpu.matmul %155, %157, %cst_83 {dimension_numbers = #tpu.dot_dimension_numbers<[1], [0], [0], [1], [0, 0, 1, 1], [], []>} : vector<8x32xf32>, vector<32x32xf32>, vector<8x32xf32> -> vector<8x32xf32>
    %159 = arith.addf %154, %158 : vector<8x32xf32>
    %160 = vector.broadcast %3 : vector<1x32xf32> to vector<8x32xf32>
    %161 = arith.addf %159, %160 : vector<8x32xf32>
    %cst_84 = arith.constant dense<0.000000e+00> : vector<8xf32>
    %162 = vector.multi_reduction <add>, %161, %cst_84 [1] : vector<8x32xf32> to vector<8xf32>
    %163 = vector.shape_cast %162 : vector<8xf32> to vector<8x1xf32>
    %cst_85 = arith.constant 3.200000e+01 : f32
    %164 = vector.broadcast %cst_85 : f32 to vector<8x1xf32>
    %165 = arith.divf %163, %164 : vector<8x1xf32>
    %166 = vector.broadcast %165 : vector<8x1xf32> to vector<8x32xf32>
    %167 = arith.subf %161, %166 : vector<8x32xf32>
    %168 = arith.mulf %167, %167 : vector<8x32xf32>
    %cst_86 = arith.constant dense<0.000000e+00> : vector<8xf32>
    %169 = vector.multi_reduction <add>, %168, %cst_86 [1] : vector<8x32xf32> to vector<8xf32>
    %170 = vector.shape_cast %169 : vector<8xf32> to vector<8x1xf32>
    %cst_87 = arith.constant 3.200000e+01 : f32
    %171 = vector.broadcast %cst_87 : f32 to vector<8x1xf32>
    %172 = arith.divf %170, %171 : vector<8x1xf32>
    %173 = vector.broadcast %165 : vector<8x1xf32> to vector<8x32xf32>
    %174 = arith.subf %161, %173 : vector<8x32xf32>
    %cst_88 = arith.constant 9.99999974E-6 : f32
    %175 = vector.broadcast %cst_88 : f32 to vector<8x1xf32>
    %176 = arith.addf %172, %175 : vector<8x1xf32>
    %177 = math.rsqrt %176 : vector<8x1xf32>
    %178 = vector.broadcast %177 : vector<8x1xf32> to vector<8x32xf32>
    %179 = arith.mulf %174, %178 : vector<8x32xf32>
    %180 = vector.broadcast %4 : vector<1x32xf32> to vector<8x32xf32>
    %181 = arith.mulf %179, %180 : vector<8x32xf32>
    %182 = vector.broadcast %5 : vector<1x32xf32> to vector<8x32xf32>
    %183 = arith.addf %181, %182 : vector<8x32xf32>
    %cst_89 = arith.constant 0.000000e+00 : f32
    %184 = vector.broadcast %cst_89 : f32 to vector<8x32xf32>
    %185 = arith.maximumf %183, %184 : vector<8x32xf32>
    %186 = vector.broadcast %6 : vector<1x32xf32> to vector<8x32xf32>
    %187 = arith.mulf %185, %186 : vector<8x32xf32>
    %cst_90 = arith.constant dense<0.000000e+00> : vector<8xf32>
    %188 = vector.multi_reduction <add>, %187, %cst_90 [1] : vector<8x32xf32> to vector<8xf32>
    %189 = vector.broadcast %7 : f32 to vector<8xf32>
    %190 = arith.addf %188, %189 : vector<8xf32>
    %c1_91 = arith.constant 1 : index
    %c0_92 = arith.constant 0 : index
    %191 = vector.load %arg6[%c1_91, %c0_92] : memref<2x8xf32, #tpu.memory_space<vmem>>, vector<1x8xf32>
    %192 = vector.shape_cast %191 : vector<1x8xf32> to vector<8xf32>
    %193 = vector.shape_cast %190 : vector<8xf32> to vector<1x8xf32>
    tpu.vector_store %arg6[%c1_91, %c0_92], %193 {strides = array<i32>} : memref<2x8xf32, #tpu.memory_space<vmem>>, vector<1x8xf32>,
    return
  }
  func.func @transform_0(%arg0: i32) -> (i32, i32, i32) {
    %c0_i32 = arith.constant 0 : i32
    %c0_i32_0 = arith.constant 0 : i32
    %c0_i32_1 = arith.constant 0 : i32
    return %arg0, %c0_i32, %c0_i32_0 : i32, i32, i32
  }
  func.func @transform_1(%arg0: i32) -> (i32, i32, i32) {
    %c0_i32 = arith.constant 0 : i32
    %c0_i32_0 = arith.constant 0 : i32
    %c0_i32_1 = arith.constant 0 : i32
    %c0_i32_2 = arith.constant 0 : i32
    return %c0_i32, %c0_i32_0, %c0_i32_1 : i32, i32, i32
  }
  func.func @transform_2(%arg0: i32) -> (i32, i32, i32) {
    %c0_i32 = arith.constant 0 : i32
    %c0_i32_0 = arith.constant 0 : i32
    %c0_i32_1 = arith.constant 0 : i32
    %c0_i32_2 = arith.constant 0 : i32
    return %c0_i32, %c0_i32_0, %c0_i32_1 : i32, i32, i32
  }
  func.func @transform_3(%arg0: i32) -> (i32, i32) {
    %c0_i32 = arith.constant 0 : i32
    %c0_i32_0 = arith.constant 0 : i32
    %c0_i32_1 = arith.constant 0 : i32
    return %c0_i32, %c0_i32_0 : i32, i32
  }
  func.func @transform_4(%arg0: i32) -> i32 {
    %c0_i32 = arith.constant 0 : i32
    %c0_i32_0 = arith.constant 0 : i32
    return %c0_i32 : i32
  }
  func.func @transform_5(%arg0: i32) -> (i32, i32) {
    %c0_i32 = arith.constant 0 : i32
    %c0_i32_0 = arith.constant 0 : i32
    return %arg0, %c0_i32 : i32, i32
  }
}

</mosaic_0001>

<llo_original>
// kernel: _predict_stage.1
$region0: #{_predict_stage.1}
  #allocation0 [shape = 'u32[]', space=smem, size = 0x4, offset = 0x4, fixed_abs, tag = 'smem constant byte address 0x4 - core index']
  #allocation1 [shape = 'u32[144,128]{1,0:T(1,128)}', space=vmem, size = 0x12000, scoped, tag = 'internal scratch']
  #allocation2 [shape = 'f32[1]{0:T(128)S(6)}', space=smem, size = 0x200, scoped, tag = 'scoped memory for _predict_stage.1']
  %s0 = inlined_call_operand.vmem [shape: f32[2,8,16], index: 0, kind: input, shape index: {}]
  %s1 = inlined_call_operand.vmem [shape: f32[3,16,32], index: 1, kind: input, shape index: {}]
  %s2 = inlined_call_operand.vmem [shape: f32[3,32,32], index: 2, kind: input, shape index: {}]
  %s3 = inlined_call_operand.vmem [shape: f32[8,32], index: 3, kind: input, shape index: {}]
  %s4 = inlined_call_operand.<no memory space> [shape: f32[1], index: 4, kind: input, shape index: {}]
  %s5 = inlined_call_operand.hbm [shape: f32[2,8], index: 5, kind: output, shape index: {}]
  %s6 = sld [smem:[#allocation0]]
  $region30: #{_predict_stage.1} parent=0
    _
  %s8 = ssub.s32 1, %s6
  %s9 = scalar_select 0, %s8, %s6
  %10 = sst [smem:[#allocation2]] %s4
  $region1: #{_predict_stage.1} parent=0
    #allocation3 [shape = 'u8[1024]{0}', space=vmem, size = 0x400, scoped, tag = 'output window, operand 0, single buffered']
    #allocation4 [shape = 's32[1]{0}', space=sflag, size = 0x4, scoped, tag = 'scoped memory for _predict_stage.1']
    %11 = vsyncpa [#allocation4], 0
    // Predicated region
    $region2: #{_predict_stage.1} parent=1 // pred_check
      _
    $region3: #{_predict_stage.1} parent=1 // pred_check_branch
      %13 = sbr.rel (0) target = $region5
    $region4: #{_predict_stage.1} parent=1 // pred_region
      _
    $region5: #{_predict_stage.1} parent=1 // pred_fallthru
      _
    // Predicated region
    $region6: #{_predict_stage.1} parent=1 // pred_check
      _
    $region7: #{_predict_stage.1} parent=1 // pred_check_branch
      %15 = sbr.rel (0) target = $region9
    $region8: #{_predict_stage.1} parent=1 // pred_region
      _
    $region9: #{_predict_stage.1} parent=1 // pred_fallthru
      _
    // Predicated region
    $region10: #{_predict_stage.1} parent=1 // pred_check
      _
    $region11: #{_predict_stage.1} parent=1 // pred_check_branch
      %17 = sbr.rel (0) target = $region13
    $region12: #{_predict_stage.1} parent=1 // pred_region
      _
    $region13: #{_predict_stage.1} parent=1 // pred_fallthru
      _
    // Predicated region
    $region14: #{_predict_stage.1} parent=1 // pred_check
      _
    $region15: #{_predict_stage.1} parent=1 // pred_check_branch
      %19 = sbr.rel (0) target = $region17
    $region16: #{_predict_stage.1} parent=1 // pred_region
      _
    $region17: #{_predict_stage.1} parent=1 // pred_fallthru
      _
    // Predicated region
    $region18: #{_predict_stage.1} parent=1 // pred_check
      _
    $region19: #{_predict_stage.1} parent=1 // pred_check_branch
      %21 = sbr.rel (0) target = $region21
    $region20: #{_predict_stage.1} parent=1 // pred_region
      _
    $region21: #{_predict_stage.1} parent=1 // pred_fallthru
      _
    %v22 = vld [vmem:[%s3] sm:$0x1]
    %v23 = vld [vmem:[%s3 + $0x1] sm:$0x1]
    %v24 = vld [vmem:[%s3 + $0x2] sm:$0x1]
    %v25 = vld [vmem:[%s3 + $0x3] sm:$0x1]
    %v26 = vld [vmem:[%s3 + $0x4] sm:$0x1]
    %v27 = vld [vmem:[%s3 + $0x5] sm:$0x1]
    %v28 = vld [vmem:[%s3 + $0x6] sm:$0x1]
    %s29 = sld [smem:[#allocation2]]
    %v30 = vld [vmem:[%s0] sm:$0xff]
    %v32 = vrot.slane %v30, 7
    %vm34 = vcmask 1040384
    %v35 = vsel %vm34, 0.0, %v32
    %v36 = vsel %vm34, %v32, 0.0
    %v37 = vld [vmem:[%s1] sm:$0xff]
    %v38 = vld [vmem:[%s1 + $0x8] sm:$0xff]
    %s39 = scalar_lea.vmem %s1, 16
    %v40 = vld [vmem:[%s39] sm:$0xff]
    %v41 = vld [vmem:[%s39 + $0x8] sm:$0xff]
    %vm44 = vcmask 1046528
    %v45 = vrot.slane %v35, 1
    %v46 = vrot.slane %v36, 1
    %v47 = vsel %vm44, %v45, %v46
    %vm48 = vcmask 130048
    %v49 = vsel %vm48, %v47, 0
    %51 = vmatprep.subr.mxu0 0.0
    %52 = vmatpush1.msra.mxu0 0.0
    %53 = vmatprep.subr.mxu0 0.0
    %54 = vmatpush1.msra.mxu0 0.0
    %55 = vmatprep.subr.mxu0 0.0
    %56 = vmatpush1.msra.mxu0 0.0
    %57 = vmatprep.subr.mxu0 0.0
    %58 = vmatpush1.msra.mxu0 0.0
    %59 = vmatprep.subr.mxu0 0.0
    %60 = vmatpush1.msra.mxu0 0.0
    %61 = vmatprep.subr.mxu0 0.0
    %62 = vmatpush1.msra.mxu0 0.0
    %63 = vmatprep.subr.mxu0 0.0
    %64 = vmatpush1.msra.mxu0 0.0
    %65 = vmatprep.subr.mxu0 0.0
    %66 = vmatpush1.msra.mxu0 0.0
    %67 = vmatprep.subr.mxu0 0.0
    %68 = vmatpush1.msra.mxu0 0.0
    %69 = vmatprep.subr.mxu0 0.0
    %70 = vmatpush1.msra.mxu0 0.0
    %71 = vmatprep.subr.mxu0 0.0
    %72 = vmatpush1.msra.mxu0 0.0
    %73 = vmatprep.subr.mxu0 0.0
    %74 = vmatpush1.msra.mxu0 0.0
    %75 = vmatprep.subr.mxu0 0.0
    %76 = vmatpush1.msra.mxu0 0.0
    %77 = vmatprep.subr.mxu0 0.0
    %78 = vmatpush1.msra.mxu0 0.0
    %79 = vmatprep.subr.mxu0 0.0
    %80 = vmatpush1.msra.mxu0 %v41
    %81 = vmatprep.subr.mxu0 0.0
    %82 = vmatpush1.msra.mxu0 %v40
    %83 = vmatprep.subr.mxu0 0.0
    %84 = vmatpush2.msra.mxu0 0.0
    %85 = vmatprep.subr.mxu0 0.0
    %86 = vmatpush2.msra.mxu0 0.0
    %87 = vmatprep.subr.mxu0 0.0
    %88 = vmatpush2.msra.mxu0 0.0
    %89 = vmatprep.subr.mxu0 0.0
    %90 = vmatpush2.msra.mxu0 0.0
    %91 = vmatprep.subr.mxu0 0.0
    %92 = vmatpush2.msra.mxu0 0.0
    %93 = vmatprep.subr.mxu0 0.0
    %94 = vmatpush2.msra.mxu0 0.0
    %95 = vmatprep.subr.mxu0 0.0
    %96 = vmatpush2.msra.mxu0 0.0
    %97 = vmatprep.subr.mxu0 0.0
    %98 = vmatpush2.msra.mxu0 0.0
    %99 = vmatprep.subr.mxu0 0.0
    %100 = vmatpush2.msra.mxu0 0.0
    %101 = vmatprep.subr.mxu0 0.0
    %102 = vmatpush2.msra.mxu0 0.0
    %103 = vmatprep.subr.mxu0 0.0
    %104 = vmatpush2.msra.mxu0 0.0
    %105 = vmatprep.subr.mxu0 0.0
    %106 = vmatpush2.msra.mxu0 0.0
    %107 = vmatprep.subr.mxu0 0.0
    %108 = vmatpush2.msra.mxu0 0.0
    %109 = vmatprep.subr.mxu0 0.0
    %110 = vmatpush2.msra.mxu0 0.0
    %111 = vmatprep.subr.mxu0 0.0
    %112 = vmatpush2.msra.mxu0 0.0
    %113 = vmatprep.subr.mxu0 0.0
    %114 = vmatpush2.msra.mxu0 0.0
    %115 = vmatprep.mubr.f32.mxu0 0.0
    %116 = vmatmul.mubr.f32.gmra.mxu0 %v49
    %v117 = vpop.f32.mrf.mxu0
    %v118 = vadd.f32 0.0, %v117
    %v119 = vpop.f32.mrf.mxu0
    %120 = vdwg.mxu0
    %v121 = vsel %vm48, %v35, 0
    %123 = vmatprep.subr.mxu0 0.0
    %124 = vmatpush1.msra.mxu0 0.0
    %125 = vmatprep.subr.mxu0 0.0
    %126 = vmatpush1.msra.mxu0 0.0
    %127 = vmatprep.subr.mxu0 0.0
    %128 = vmatpush1.msra.mxu0 0.0
    %129 = vmatprep.subr.mxu0 0.0
    %130 = vmatpush1.msra.mxu0 0.0
    %131 = vmatprep.subr.mxu0 0.0
    %132 = vmatpush1.msra.mxu0 0.0
    %133 = vmatprep.subr.mxu0 0.0
    %134 = vmatpush1.msra.mxu0 0.0
    %135 = vmatprep.subr.mxu0 0.0
    %136 = vmatpush1.msra.mxu0 0.0
    %137 = vmatprep.subr.mxu0 0.0
    %138 = vmatpush1.msra.mxu0 0.0
    %139 = vmatprep.subr.mxu0 0.0
    %140 = vmatpush1.msra.mxu0 0.0
    %141 = vmatprep.subr.mxu0 0.0
    %142 = vmatpush1.msra.mxu0 0.0
    %143 = vmatprep.subr.mxu0 0.0
    %144 = vmatpush1.msra.mxu0 0.0
    %145 = vmatprep.subr.mxu0 0.0
    %146 = vmatpush1.msra.mxu0 0.0
    %147 = vmatprep.subr.mxu0 0.0
    %148 = vmatpush1.msra.mxu0 0.0
    %149 = vmatprep.subr.mxu0 0.0
    %150 = vmatpush1.msra.mxu0 0.0
    %151 = vmatprep.subr.mxu0 0.0
    %152 = vmatpush1.msra.mxu0 %v38
    %153 = vmatprep.subr.mxu0 0.0
    %154 = vmatpush1.msra.mxu0 %v37
    %155 = vmatprep.subr.mxu0 0.0
    %156 = vmatpush2.msra.mxu0 0.0
    %157 = vmatprep.subr.mxu0 0.0
    %158 = vmatpush2.msra.mxu0 0.0
    %159 = vmatprep.subr.mxu0 0.0
    %160 = vmatpush2.msra.mxu0 0.0
    %161 = vmatprep.subr.mxu0 0.0
    %162 = vmatpush2.msra.mxu0 0.0
    %163 = vmatprep.subr.mxu0 0.0
    %164 = vmatpush2.msra.mxu0 0.0
    %165 = vmatprep.subr.mxu0 0.0
    %166 = vmatpush2.msra.mxu0 0.0
    %167 = vmatprep.subr.mxu0 0.0
    %168 = vmatpush2.msra.mxu0 0.0
    %169 = vmatprep.subr.mxu0 0.0
    %170 = vmatpush2.msra.mxu0 0.0
    %171 = vmatprep.subr.mxu0 0.0
    %172 = vmatpush2.msra.mxu0 0.0
    %173 = vmatprep.subr.mxu0 0.0
    %174 = vmatpush2.msra.mxu0 0.0
    %175 = vmatprep.subr.mxu0 0.0
    %176 = vmatpush2.msra.mxu0 0.0
    %177 = vmatprep.subr.mxu0 0.0
    %178 = vmatpush2.msra.mxu0 0.0
    %179 = vmatprep.subr.mxu0 0.0
    %180 = vmatpush2.msra.mxu0 0.0
    %181 = vmatprep.subr.mxu0 0.0
    %182 = vmatpush2.msra.mxu0 0.0
    %183 = vmatprep.subr.mxu0 0.0
    %184 = vmatpush2.msra.mxu0 0.0
    %185 = vmatprep.subr.mxu0 0.0
    %186 = vmatpush2.msra.mxu0 0.0
    %187 = vmatprep.mubr.f32.mxu0 0.0
    %188 = vmatmul.mubr.f32.gmra.mxu0 %v121
    %v189 = vpop.f32.mrf.mxu0
    %v190 = vadd.f32 %v118, %v189
    %v191 = vpop.f32.mrf.mxu0
    %192 = vdwg.mxu0
    %s193 = scalar_lea.vmem %s1, 32
    %v194 = vld [vmem:[%s193] sm:$0xff]
    %v195 = vld [vmem:[%s193 + $0x8] sm:$0xff]
    %vm196 = vcmask 1045504
    %v197 = vrot.slane %v35, 2
    %v198 = vrot.slane %v36, 2
    %v199 = vsel %vm196, %v197, %v198
    %v200 = vsel %vm48, %v199, 0
    %202 = vmatprep.subr.mxu0 0.0
    %203 = vmatpush1.msra.mxu0 0.0
    %204 = vmatprep.subr.mxu0 0.0
    %205 = vmatpush1.msra.mxu0 0.0
    %206 = vmatprep.subr.mxu0 0.0
    %207 = vmatpush1.msra.mxu0 0.0
    %208 = vmatprep.subr.mxu0 0.0
    %209 = vmatpush1.msra.mxu0 0.0
    %210 = vmatprep.subr.mxu0 0.0
    %211 = vmatpush1.msra.mxu0 0.0
    %212 = vmatprep.subr.mxu0 0.0
    %213 = vmatpush1.msra.mxu0 0.0
    %214 = vmatprep.subr.mxu0 0.0
    %215 = vmatpush1.msra.mxu0 0.0
    %216 = vmatprep.subr.mxu0 0.0
    %217 = vmatpush1.msra.mxu0 0.0
    %218 = vmatprep.subr.mxu0 0.0
    %219 = vmatpush1.msra.mxu0 0.0
    %220 = vmatprep.subr.mxu0 0.0
    %221 = vmatpush1.msra.mxu0 0.0
    %222 = vmatprep.subr.mxu0 0.0
    %223 = vmatpush1.msra.mxu0 0.0
    %224 = vmatprep.subr.mxu0 0.0
    %225 = vmatpush1.msra.mxu0 0.0
    %226 = vmatprep.subr.mxu0 0.0
    %227 = vmatpush1.msra.mxu0 0.0
    %228 = vmatprep.subr.mxu0 0.0
    %229 = vmatpush1.msra.mxu0 0.0
    %230 = vmatprep.subr.mxu0 0.0
    %231 = vmatpush1.msra.mxu0 %v195
    %232 = vmatprep.subr.mxu0 0.0
    %233 = vmatpush1.msra.mxu0 %v194
    %234 = vmatprep.subr.mxu0 0.0
    %235 = vmatpush2.msra.mxu0 0.0
    %236 = vmatprep.subr.mxu0 0.0
    %237 = vmatpush2.msra.mxu0 0.0
    %238 = vmatprep.subr.mxu0 0.0
    %239 = vmatpush2.msra.mxu0 0.0
    %240 = vmatprep.subr.mxu0 0.0
    %241 = vmatpush2.msra.mxu0 0.0
    %242 = vmatprep.subr.mxu0 0.0
    %243 = vmatpush2.msra.mxu0 0.0
    %244 = vmatprep.subr.mxu0 0.0
    %245 = vmatpush2.msra.mxu0 0.0
    %246 = vmatprep.subr.mxu0 0.0
    %247 = vmatpush2.msra.mxu0 0.0
    %248 = vmatprep.subr.mxu0 0.0
    %249 = vmatpush2.msra.mxu0 0.0
    %250 = vmatprep.subr.mxu0 0.0
    %251 = vmatpush2.msra.mxu0 0.0
    %252 = vmatprep.subr.mxu0 0.0
    %253 = vmatpush2.msra.mxu0 0.0
    %254 = vmatprep.subr.mxu0 0.0
    %255 = vmatpush2.msra.mxu0 0.0
    %256 = vmatprep.subr.mxu0 0.0
    %257 = vmatpush2.msra.mxu0 0.0
    %258 = vmatprep.subr.mxu0 0.0
    %259 = vmatpush2.msra.mxu0 0.0
    %260 = vmatprep.subr.mxu0 0.0
    %261 = vmatpush2.msra.mxu0 0.0
    %262 = vmatprep.subr.mxu0 0.0
    %263 = vmatpush2.msra.mxu0 0.0
    %264 = vmatprep.subr.mxu0 0.0
    %265 = vmatpush2.msra.mxu0 0.0
    %266 = vmatprep.mubr.f32.mxu0 0.0
    %267 = vmatmul.mubr.f32.gmra.mxu0 %v200
    %v268 = vpop.f32.mrf.mxu0
    %v269 = vadd.f32 0.0, %v268
    %v270 = vpop.f32.mrf.mxu0
    %271 = vdwg.mxu0
    %v272 = vadd.f32 %v190, %v269
    %v273 = vlaneseq
    %v274 = vshrl.u32 %v273, 7
    %v275 = vsub.s32 0, %v274
    %v276 = vrot.slane %v22, %v275
    %v277 = vadd.f32 %v272, %v276
    %vm278 = vcmask 261120
    %v279 = vsel %vm278, %v277, 0.0
    %280 = vadd.xlane.f32.xlu0 %v279
    %v281 = vpop.xlane.xlu0 %280
    %v282 = vrcp.pop 32.0
    %v283 = vmul.f32 %v281, %v282
    %v284 = vsub.f32 %v277, %v283
    %v285 = vmul.f32 %v284, %v284
    %v286 = vsel %vm278, %v285, 0.0
    %287 = vadd.xlane.f32.xlu0 %v286
    %v288 = vpop.xlane.xlu0 %287
    %v289 = vmul.f32 %v288, %v282
    %v290 = vadd.f32 %v289, 1e-05
    %v291 = vrsqrt.pop %v290
    %v292 = vmul.f32 %v284, %v291
    %v293 = vlaneseq
    %v294 = vshrl.u32 %v293, 7
    %v295 = vsub.s32 0, %v294
    %v296 = vrot.slane %v23, %v295
    %v297 = vmul.f32 %v292, %v296
    %v298 = vlaneseq
    %v299 = vshrl.u32 %v298, 7
    %v300 = vsub.s32 0, %v299
    %v301 = vrot.slane %v24, %v300
    %v302 = vadd.f32 %v297, %v301
    %v303 = vmax.f32 %v302, 0.0
    %v305 = vrot.slane %v303, 7
    %v307 = vsel %vm34, 0.0, %v305
    %v308 = vsel %vm34, %v305, 0.0
    %v309 = vld [vmem:[%s2] sm:$0xff]
    %v310 = vld [vmem:[%s2 + $0x8] sm:$0xff]
    %v311 = vld [vmem:[%s2 + $0x10] sm:$0xff]
    %v312 = vld [vmem:[%s2 + $0x18] sm:$0xff]
    %s313 = scalar_lea.vmem %s2, 32
    %v314 = vld [vmem:[%s313] sm:$0xff]
    %v315 = vld [vmem:[%s313 + $0x8] sm:$0xff]
    %v316 = vld [vmem:[%s313 + $0x10] sm:$0xff]
    %v317 = vld [vmem:[%s313 + $0x18] sm:$0xff]
    %v320 = vrot.slane %v307, 1
    %v321 = vrot.slane %v308, 1
    %v322 = vsel %vm44, %v320, %v321
    %v323 = vsel %vm278, %v322, 0
    %325 = vmatprep.subr.mxu0 0.0
    %326 = vmatpush1.msra.mxu0 0.0
    %327 = vmatprep.subr.mxu0 0.0
    %328 = vmatpush1.msra.mxu0 0.0
    %329 = vmatprep.subr.mxu0 0.0
    %330 = vmatpush1.msra.mxu0 0.0
    %331 = vmatprep.subr.mxu0 0.0
    %332 = vmatpush1.msra.mxu0 0.0
    %333 = vmatprep.subr.mxu0 0.0
    %334 = vmatpush1.msra.mxu0 0.0
    %335 = vmatprep.subr.mxu0 0.0
    %336 = vmatpush1.msra.mxu0 0.0
    %337 = vmatprep.subr.mxu0 0.0
    %338 = vmatpush1.msra.mxu0 0.0
    %339 = vmatprep.subr.mxu0 0.0
    %340 = vmatpush1.msra.mxu0 0.0
    %341 = vmatprep.subr.mxu0 0.0
    %342 = vmatpush1.msra.mxu0 0.0
    %343 = vmatprep.subr.mxu0 0.0
    %344 = vmatpush1.msra.mxu0 0.0
    %345 = vmatprep.subr.mxu0 0.0
    %346 = vmatpush1.msra.mxu0 0.0
    %347 = vmatprep.subr.mxu0 0.0
    %348 = vmatpush1.msra.mxu0 0.0
    %349 = vmatprep.subr.mxu0 0.0
    %350 = vmatpush1.msra.mxu0 %v317
    %351 = vmatprep.subr.mxu0 0.0
    %352 = vmatpush1.msra.mxu0 %v316
    %353 = vmatprep.subr.mxu0 0.0
    %354 = vmatpush1.msra.mxu0 %v315
    %355 = vmatprep.subr.mxu0 0.0
    %356 = vmatpush1.msra.mxu0 %v314
    %357 = vmatprep.subr.mxu0 0.0
    %358 = vmatpush2.msra.mxu0 0.0
    %359 = vmatprep.subr.mxu0 0.0
    %360 = vmatpush2.msra.mxu0 0.0
    %361 = vmatprep.subr.mxu0 0.0
    %362 = vmatpush2.msra.mxu0 0.0
    %363 = vmatprep.subr.mxu0 0.0
    %364 = vmatpush2.msra.mxu0 0.0
    %365 = vmatprep.subr.mxu0 0.0
    %366 = vmatpush2.msra.mxu0 0.0
    %367 = vmatprep.subr.mxu0 0.0
    %368 = vmatpush2.msra.mxu0 0.0
    %369 = vmatprep.subr.mxu0 0.0
    %370 = vmatpush2.msra.mxu0 0.0
    %371 = vmatprep.subr.mxu0 0.0
    %372 = vmatpush2.msra.mxu0 0.0
    %373 = vmatprep.subr.mxu0 0.0
    %374 = vmatpush2.msra.mxu0 0.0
    %375 = vmatprep.subr.mxu0 0.0
    %376 = vmatpush2.msra.mxu0 0.0
    %377 = vmatprep.subr.mxu0 0.0
    %378 = vmatpush2.msra.mxu0 0.0
    %379 = vmatprep.subr.mxu0 0.0
    %380 = vmatpush2.msra.mxu0 0.0
    %381 = vmatprep.subr.mxu0 0.0
    %382 = vmatpush2.msra.mxu0 0.0
    %383 = vmatprep.subr.mxu0 0.0
    %384 = vmatpush2.msra.mxu0 0.0
    %385 = vmatprep.subr.mxu0 0.0
    %386 = vmatpush2.msra.mxu0 0.0
    %387 = vmatprep.subr.mxu0 0.0
    %388 = vmatpush2.msra.mxu0 0.0
    %389 = vmatprep.mubr.f32.mxu0 0.0
    %390 = vmatmul.mubr.f32.gmra.mxu0 %v323
    %v391 = vpop.f32.mrf.mxu0
    %v392 = vadd.f32 0.0, %v391
    %v393 = vpop.f32.mrf.mxu0
    %394 = vdwg.mxu0
    %v395 = vsel %vm278, %v307, 0
    %397 = vmatprep.subr.mxu0 0.0
    %398 = vmatpush1.msra.mxu0 0.0
    %399 = vmatprep.subr.mxu0 0.0
    %400 = vmatpush1.msra.mxu0 0.0
    %401 = vmatprep.subr.mxu0 0.0
    %402 = vmatpush1.msra.mxu0 0.0
    %403 = vmatprep.subr.mxu0 0.0
    %404 = vmatpush1.msra.mxu0 0.0
    %405 = vmatprep.subr.mxu0 0.0
    %406 = vmatpush1.msra.mxu0 0.0
    %407 = vmatprep.subr.mxu0 0.0
    %408 = vmatpush1.msra.mxu0 0.0
    %409 = vmatprep.subr.mxu0 0.0
    %410 = vmatpush1.msra.mxu0 0.0
    %411 = vmatprep.subr.mxu0 0.0
    %412 = vmatpush1.msra.mxu0 0.0
    %413 = vmatprep.subr.mxu0 0.0
    %414 = vmatpush1.msra.mxu0 0.0
    %415 = vmatprep.subr.mxu0 0.0
    %416 = vmatpush1.msra.mxu0 0.0
    %417 = vmatprep.subr.mxu0 0.0
    %418 = vmatpush1.msra.mxu0 0.0
    %419 = vmatprep.subr.mxu0 0.0
    %420 = vmatpush1.msra.mxu0 0.0
    %421 = vmatprep.subr.mxu0 0.0
    %422 = vmatpush1.msra.mxu0 %v312
    %423 = vmatprep.subr.mxu0 0.0
    %424 = vmatpush1.msra.mxu0 %v311
    %425 = vmatprep.subr.mxu0 0.0
    %426 = vmatpush1.msra.mxu0 %v310
    %427 = vmatprep.subr.mxu0 0.0
    %428 = vmatpush1.msra.mxu0 %v309
    %429 = vmatprep.subr.mxu0 0.0
    %430 = vmatpush2.msra.mxu0 0.0
    %431 = vmatprep.subr.mxu0 0.0
    %432 = vmatpush2.msra.mxu0 0.0
    %433 = vmatprep.subr.mxu0 0.0
    %434 = vmatpush2.msra.mxu0 0.0
    %435 = vmatprep.subr.mxu0 0.0
    %436 = vmatpush2.msra.mxu0 0.0
    %437 = vmatprep.subr.mxu0 0.0
    %438 = vmatpush2.msra.mxu0 0.0
    %439 = vmatprep.subr.mxu0 0.0
    %440 = vmatpush2.msra.mxu0 0.0
    %441 = vmatprep.subr.mxu0 0.0
    %442 = vmatpush2.msra.mxu0 0.0
    %443 = vmatprep.subr.mxu0 0.0
    %444 = vmatpush2.msra.mxu0 0.0
    %445 = vmatprep.subr.mxu0 0.0
    %446 = vmatpush2.msra.mxu0 0.0
    %447 = vmatprep.subr.mxu0 0.0
    %448 = vmatpush2.msra.mxu0 0.0
    %449 = vmatprep.subr.mxu0 0.0
    %450 = vmatpush2.msra.mxu0 0.0
    %451 = vmatprep.subr.mxu0 0.0
    %452 = vmatpush2.msra.mxu0 0.0
    %453 = vmatprep.subr.mxu0 0.0
    %454 = vmatpush2.msra.mxu0 0.0
    %455 = vmatprep.subr.mxu0 0.0
    %456 = vmatpush2.msra.mxu0 0.0
    %457 = vmatprep.subr.mxu0 0.0
    %458 = vmatpush2.msra.mxu0 0.0
    %459 = vmatprep.subr.mxu0 0.0
    %460 = vmatpush2.msra.mxu0 0.0
    %461 = vmatprep.mubr.f32.mxu0 0.0
    %462 = vmatmul.mubr.f32.gmra.mxu0 %v395
    %v463 = vpop.f32.mrf.mxu0
    %v464 = vadd.f32 %v392, %v463
    %v465 = vpop.f32.mrf.mxu0
    %466 = vdwg.mxu0
    %s467 = scalar_lea.vmem %s2, 64
    %v468 = vld [vmem:[%s467] sm:$0xff]
    %v469 = vld [vmem:[%s467 + $0x8] sm:$0xff]
    %v470 = vld [vmem:[%s467 + $0x10] sm:$0xff]
    %v471 = vld [vmem:[%s467 + $0x18] sm:$0xff]
    %v472 = vrot.slane %v307, 2
    %v473 = vrot.slane %v308, 2
    %v474 = vsel %vm196, %v472, %v473
    %v475 = vsel %vm278, %v474, 0
    %477 = vmatprep.subr.mxu0 0.0
    %478 = vmatpush1.msra.mxu0 0.0
    %479 = vmatprep.subr.mxu0 0.0
    %480 = vmatpush1.msra.mxu0 0.0
    %481 = vmatprep.subr.mxu0 0.0
    %482 = vmatpush1.msra.mxu0 0.0
    %483 = vmatprep.subr.mxu0 0.0
    %484 = vmatpush1.msra.mxu0 0.0
    %485 = vmatprep.subr.mxu0 0.0
    %486 = vmatpush1.msra.mxu0 0.0
    %487 = vmatprep.subr.mxu0 0.0
    %488 = vmatpush1.msra.mxu0 0.0
    %489 = vmatprep.subr.mxu0 0.0
    %490 = vmatpush1.msra.mxu0 0.0
    %491 = vmatprep.subr.mxu0 0.0
    %492 = vmatpush1.msra.mxu0 0.0
    %493 = vmatprep.subr.mxu0 0.0
    %494 = vmatpush1.msra.mxu0 0.0
    %495 = vmatprep.subr.mxu0 0.0
    %496 = vmatpush1.msra.mxu0 0.0
    %497 = vmatprep.subr.mxu0 0.0
    %498 = vmatpush1.msra.mxu0 0.0
    %499 = vmatprep.subr.mxu0 0.0
    %500 = vmatpush1.msra.mxu0 0.0
    %501 = vmatprep.subr.mxu0 0.0
    %502 = vmatpush1.msra.mxu0 %v471
    %503 = vmatprep.subr.mxu0 0.0
    %504 = vmatpush1.msra.mxu0 %v470
    %505 = vmatprep.subr.mxu0 0.0
    %506 = vmatpush1.msra.mxu0 %v469
    %507 = vmatprep.subr.mxu0 0.0
    %508 = vmatpush1.msra.mxu0 %v468
    %509 = vmatprep.subr.mxu0 0.0
    %510 = vmatpush2.msra.mxu0 0.0
    %511 = vmatprep.subr.mxu0 0.0
    %512 = vmatpush2.msra.mxu0 0.0
    %513 = vmatprep.subr.mxu0 0.0
    %514 = vmatpush2.msra.mxu0 0.0
    %515 = vmatprep.subr.mxu0 0.0
    %516 = vmatpush2.msra.mxu0 0.0
    %517 = vmatprep.subr.mxu0 0.0
    %518 = vmatpush2.msra.mxu0 0.0
    %519 = vmatprep.subr.mxu0 0.0
    %520 = vmatpush2.msra.mxu0 0.0
    %521 = vmatprep.subr.mxu0 0.0
    %522 = vmatpush2.msra.mxu0 0.0
    %523 = vmatprep.subr.mxu0 0.0
    %524 = vmatpush2.msra.mxu0 0.0
    %525 = vmatprep.subr.mxu0 0.0
    %526 = vmatpush2.msra.mxu0 0.0
    %527 = vmatprep.subr.mxu0 0.0
    %528 = vmatpush2.msra.mxu0 0.0
    %529 = vmatprep.subr.mxu0 0.0
    %530 = vmatpush2.msra.mxu0 0.0
    %531 = vmatprep.subr.mxu0 0.0
    %532 = vmatpush2.msra.mxu0 0.0
    %533 = vmatprep.subr.mxu0 0.0
    %534 = vmatpush2.msra.mxu0 0.0
    %535 = vmatprep.subr.mxu0 0.0
    %536 = vmatpush2.msra.mxu0 0.0
    %537 = vmatprep.subr.mxu0 0.0
    %538 = vmatpush2.msra.mxu0 0.0
    %539 = vmatprep.subr.mxu0 0.0
    %540 = vmatpush2.msra.mxu0 0.0
    %541 = vmatprep.mubr.f32.mxu0 0.0
    %542 = vmatmul.mubr.f32.gmra.mxu0 %v475
    %v543 = vpop.f32.mrf.mxu0
    %v544 = vadd.f32 0.0, %v543
    %v545 = vpop.f32.mrf.mxu0
    %546 = vdwg.mxu0
    %v547 = vadd.f32 %v464, %v544
    %v548 = vlaneseq
    %v549 = vshrl.u32 %v548, 7
    %v550 = vsub.s32 0, %v549
    %v551 = vrot.slane %v25, %v550
    %v552 = vadd.f32 %v547, %v551
    %v553 = vsel %vm278, %v552, 0.0
    %554 = vadd.xlane.f32.xlu0 %v553
    %v555 = vpop.xlane.xlu0 %554
    %v556 = vmul.f32 %v555, %v282
    %v557 = vsub.f32 %v552, %v556
    %v558 = vmul.f32 %v557, %v557
    %v559 = vsel %vm278, %v558, 0.0
    %560 = vadd.xlane.f32.xlu0 %v559
    %v561 = vpop.xlane.xlu0 %560
    %v562 = vmul.f32 %v561, %v282
    %v563 = vadd.f32 %v562, 1e-05
    %v564 = vrsqrt.pop %v563
    %v565 = vmul.f32 %v557, %v564
    %v566 = vlaneseq
    %v567 = vshrl.u32 %v566, 7
    %v568 = vsub.s32 0, %v567
    %v569 = vrot.slane %v26, %v568
    %v570 = vmul.f32 %v565, %v569
    %v571 = vlaneseq
    %v572 = vshrl.u32 %v571, 7
    %v573 = vsub.s32 0, %v572
    %v574 = vrot.slane %v27, %v573
    %v575 = vadd.f32 %v570, %v574
    %v576 = vmax.f32 %v575, 0.0
    %v577 = vlaneseq
    %v578 = vshrl.u32 %v577, 7
    %v579 = vsub.s32 0, %v578
    %v580 = vrot.slane %v28, %v579
    %v581 = vmul.f32 %v576, %v580
    %v582 = vsel %vm278, %v581, 0.0
    %583 = vadd.xlane.f32.xlu0 %v582
    %v584 = vpop.xlane.xlu0 %583
    %v585 = vstv %s29
    %v586 = vadd.f32 %v584, %v585
    %v588 = vlaneseq
    %v589 = vand.u32 %v588, 127
    %v590 = vlaneseq
    %v591 = vshrl.u32 %v590, 7
    %v592 = vsub.s32 %v589, %v591
    %v593 = vrot.slane %v586, %v592
    %vm595 = vcmask 57344
    %596 = vst.msk [vmem:[#allocation3] sm:$0x1] %vm595, %v593
    %s597 = scalar_lea.vmem %s0, 8
    %v598 = vld [vmem:[%s597] sm:$0xff]
    %v600 = vrot.slane %v598, 7
    %v602 = vsel %vm34, 0.0, %v600
    %v603 = vsel %vm34, %v600, 0.0
    %v604 = vld [vmem:[%s1] sm:$0xff]
    %v605 = vld [vmem:[%s1 + $0x8] sm:$0xff]
    %v606 = vld [vmem:[%s39] sm:$0xff]
    %v607 = vld [vmem:[%s39 + $0x8] sm:$0xff]
    %v610 = vrot.slane %v602, 1
    %v611 = vrot.slane %v603, 1
    %v612 = vsel %vm44, %v610, %v611
    %v613 = vsel %vm48, %v612, 0
    %615 = vmatprep.subr.mxu0 0.0
    %616 = vmatpush1.msra.mxu0 0.0
    %617 = vmatprep.subr.mxu0 0.0
    %618 = vmatpush1.msra.mxu0 0.0
    %619 = vmatprep.subr.mxu0 0.0
    %620 = vmatpush1.msra.mxu0 0.0
    %621 = vmatprep.subr.mxu0 0.0
    %622 = vmatpush1.msra.mxu0 0.0
    %623 = vmatprep.subr.mxu0 0.0
    %624 = vmatpush1.msra.mxu0 0.0
    %625 = vmatprep.subr.mxu0 0.0
    %626 = vmatpush1.msra.mxu0 0.0
    %627 = vmatprep.subr.mxu0 0.0
    %628 = vmatpush1.msra.mxu0 0.0
    %629 = vmatprep.subr.mxu0 0.0
    %630 = vmatpush1.msra.mxu0 0.0
    %631 = vmatprep.subr.mxu0 0.0
    %632 = vmatpush1.msra.mxu0 0.0
    %633 = vmatprep.subr.mxu0 0.0
    %634 = vmatpush1.msra.mxu0 0.0
    %635 = vmatprep.subr.mxu0 0.0
    %636 = vmatpush1.msra.mxu0 0.0
    %637 = vmatprep.subr.mxu0 0.0
    %638 = vmatpush1.msra.mxu0 0.0
    %639 = vmatprep.subr.mxu0 0.0
    %640 = vmatpush1.msra.mxu0 0.0
    %641 = vmatprep.subr.mxu0 0.0
    %642 = vmatpush1.msra.mxu0 0.0
    %643 = vmatprep.subr.mxu0 0.0
    %644 = vmatpush1.msra.mxu0 %v607
    %645 = vmatprep.subr.mxu0 0.0
    %646 = vmatpush1.msra.mxu0 %v606
    %647 = vmatprep.subr.mxu0 0.0
    %648 = vmatpush2.msra.mxu0 0.0
    %649 = vmatprep.subr.mxu0 0.0
    %650 = vmatpush2.msra.mxu0 0.0
    %651 = vmatprep.subr.mxu0 0.0
    %652 = vmatpush2.msra.mxu0 0.0
    %653 = vmatprep.subr.mxu0 0.0
    %654 = vmatpush2.msra.mxu0 0.0
    %655 = vmatprep.subr.mxu0 0.0
    %656 = vmatpush2.msra.mxu0 0.0
    %657 = vmatprep.subr.mxu0 0.0
    %658 = vmatpush2.msra.mxu0 0.0
    %659 = vmatprep.subr.mxu0 0.0
    %660 = vmatpush2.msra.mxu0 0.0
    %661 = vmatprep.subr.mxu0 0.0
    %662 = vmatpush2.msra.mxu0 0.0
    %663 = vmatprep.subr.mxu0 0.0
    %664 = vmatpush2.msra.mxu0 0.0
    %665 = vmatprep.subr.mxu0 0.0
    %666 = vmatpush2.msra.mxu0 0.0
    %667 = vmatprep.subr.mxu0 0.0
    %668 = vmatpush2.msra.mxu0 0.0
    %669 = vmatprep.subr.mxu0 0.0
    %670 = vmatpush2.msra.mxu0 0.0
    %671 = vmatprep.subr.mxu0 0.0
    %672 = vmatpush2.msra.mxu0 0.0
    %673 = vmatprep.subr.mxu0 0.0
    %674 = vmatpush2.msra.mxu0 0.0
    %675 = vmatprep.subr.mxu0 0.0
    %676 = vmatpush2.msra.mxu0 0.0
    %677 = vmatprep.subr.mxu0 0.0
    %678 = vmatpush2.msra.mxu0 0.0
    %679 = vmatprep.mubr.f32.mxu0 0.0
    %680 = vmatmul.mubr.f32.gmra.mxu0 %v613
    %v681 = vpop.f32.mrf.mxu0
    %v682 = vadd.f32 0.0, %v681
    %v683 = vpop.f32.mrf.mxu0
    %684 = vdwg.mxu0
    %v685 = vsel %vm48, %v602, 0
    %687 = vmatprep.subr.mxu0 0.0
    %688 = vmatpush1.msra.mxu0 0.0
    %689 = vmatprep.subr.mxu0 0.0
    %690 = vmatpush1.msra.mxu0 0.0
    %691 = vmatprep.subr.mxu0 0.0
    %692 = vmatpush1.msra.mxu0 0.0
    %693 = vmatprep.subr.mxu0 0.0
    %694 = vmatpush1.msra.mxu0 0.0
    %695 = vmatprep.subr.mxu0 0.0
    %696 = vmatpush1.msra.mxu0 0.0
    %697 = vmatprep.subr.mxu0 0.0
    %698 = vmatpush1.msra.mxu0 0.0
    %699 = vmatprep.subr.mxu0 0.0
    %700 = vmatpush1.msra.mxu0 0.0
    %701 = vmatprep.subr.mxu0 0.0
    %702 = vmatpush1.msra.mxu0 0.0
    %703 = vmatprep.subr.mxu0 0.0
    %704 = vmatpush1.msra.mxu0 0.0
    %705 = vmatprep.subr.mxu0 0.0
    %706 = vmatpush1.msra.mxu0 0.0
    %707 = vmatprep.subr.mxu0 0.0
    %708 = vmatpush1.msra.mxu0 0.0
    %709 = vmatprep.subr.mxu0 0.0
    %710 = vmatpush1.msra.mxu0 0.0
    %711 = vmatprep.subr.mxu0 0.0
    %712 = vmatpush1.msra.mxu0 0.0
    %713 = vmatprep.subr.mxu0 0.0
    %714 = vmatpush1.msra.mxu0 0.0
    %715 = vmatprep.subr.mxu0 0.0
    %716 = vmatpush1.msra.mxu0 %v605
    %717 = vmatprep.subr.mxu0 0.0
    %718 = vmatpush1.msra.mxu0 %v604
    %719 = vmatprep.subr.mxu0 0.0
    %720 = vmatpush2.msra.mxu0 0.0
    %721 = vmatprep.subr.mxu0 0.0
    %722 = vmatpush2.msra.mxu0 0.0
    %723 = vmatprep.subr.mxu0 0.0
    %724 = vmatpush2.msra.mxu0 0.0
    %725 = vmatprep.subr.mxu0 0.0
    %726 = vmatpush2.msra.mxu0 0.0
    %727 = vmatprep.subr.mxu0 0.0
    %728 = vmatpush2.msra.mxu0 0.0
    %729 = vmatprep.subr.mxu0 0.0
    %730 = vmatpush2.msra.mxu0 0.0
    %731 = vmatprep.subr.mxu0 0.0
    %732 = vmatpush2.msra.mxu0 0.0
    %733 = vmatprep.subr.mxu0 0.0
    %734 = vmatpush2.msra.mxu0 0.0
    %735 = vmatprep.subr.mxu0 0.0
    %736 = vmatpush2.msra.mxu0 0.0
    %737 = vmatprep.subr.mxu0 0.0
    %738 = vmatpush2.msra.mxu0 0.0
    %739 = vmatprep.subr.mxu0 0.0
    %740 = vmatpush2.msra.mxu0 0.0
    %741 = vmatprep.subr.mxu0 0.0
    %742 = vmatpush2.msra.mxu0 0.0
    %743 = vmatprep.subr.mxu0 0.0
    %744 = vmatpush2.msra.mxu0 0.0
    %745 = vmatprep.subr.mxu0 0.0
    %746 = vmatpush2.msra.mxu0 0.0
    %747 = vmatprep.subr.mxu0 0.0
    %748 = vmatpush2.msra.mxu0 0.0
    %749 = vmatprep.subr.mxu0 0.0
    %750 = vmatpush2.msra.mxu0 0.0
    %751 = vmatprep.mubr.f32.mxu0 0.0
    %752 = vmatmul.mubr.f32.gmra.mxu0 %v685
    %v753 = vpop.f32.mrf.mxu0
    %v754 = vadd.f32 %v682, %v753
    %v755 = vpop.f32.mrf.mxu0
    %756 = vdwg.mxu0
    %v757 = vld [vmem:[%s193] sm:$0xff]
    %v758 = vld [vmem:[%s193 + $0x8] sm:$0xff]
    %v759 = vrot.slane %v602, 2
    %v760 = vrot.slane %v603, 2
    %v761 = vsel %vm196, %v759, %v760
    %v762 = vsel %vm48, %v761, 0
    %764 = vmatprep.subr.mxu0 0.0
    %765 = vmatpush1.msra.mxu0 0.0
    %766 = vmatprep.subr.mxu0 0.0
    %767 = vmatpush1.msra.mxu0 0.0
    %768 = vmatprep.subr.mxu0 0.0
    %769 = vmatpush1.msra.mxu0 0.0
    %770 = vmatprep.subr.mxu0 0.0
    %771 = vmatpush1.msra.mxu0 0.0
    %772 = vmatprep.subr.mxu0 0.0
    %773 = vmatpush1.msra.mxu0 0.0
    %774 = vmatprep.subr.mxu0 0.0
    %775 = vmatpush1.msra.mxu0 0.0
    %776 = vmatprep.subr.mxu0 0.0
    %777 = vmatpush1.msra.mxu0 0.0
    %778 = vmatprep.subr.mxu0 0.0
    %779 = vmatpush1.msra.mxu0 0.0
    %780 = vmatprep.subr.mxu0 0.0
    %781 = vmatpush1.msra.mxu0 0.0
    %782 = vmatprep.subr.mxu0 0.0
    %783 = vmatpush1.msra.mxu0 0.0
    %784 = vmatprep.subr.mxu0 0.0
    %785 = vmatpush1.msra.mxu0 0.0
    %786 = vmatprep.subr.mxu0 0.0
    %787 = vmatpush1.msra.mxu0 0.0
    %788 = vmatprep.subr.mxu0 0.0
    %789 = vmatpush1.msra.mxu0 0.0
    %790 = vmatprep.subr.mxu0 0.0
    %791 = vmatpush1.msra.mxu0 0.0
    %792 = vmatprep.subr.mxu0 0.0
    %793 = vmatpush1.msra.mxu0 %v758
    %794 = vmatprep.subr.mxu0 0.0
    %795 = vmatpush1.msra.mxu0 %v757
    %796 = vmatprep.subr.mxu0 0.0
    %797 = vmatpush2.msra.mxu0 0.0
    %798 = vmatprep.subr.mxu0 0.0
    %799 = vmatpush2.msra.mxu0 0.0
    %800 = vmatprep.subr.mxu0 0.0
    %801 = vmatpush2.msra.mxu0 0.0
    %802 = vmatprep.subr.mxu0 0.0
    %803 = vmatpush2.msra.mxu0 0.0
    %804 = vmatprep.subr.mxu0 0.0
    %805 = vmatpush2.msra.mxu0 0.0
    %806 = vmatprep.subr.mxu0 0.0
    %807 = vmatpush2.msra.mxu0 0.0
    %808 = vmatprep.subr.mxu0 0.0
    %809 = vmatpush2.msra.mxu0 0.0
    %810 = vmatprep.subr.mxu0 0.0
    %811 = vmatpush2.msra.mxu0 0.0
    %812 = vmatprep.subr.mxu0 0.0
    %813 = vmatpush2.msra.mxu0 0.0
    %814 = vmatprep.subr.mxu0 0.0
    %815 = vmatpush2.msra.mxu0 0.0
    %816 = vmatprep.subr.mxu0 0.0
    %817 = vmatpush2.msra.mxu0 0.0
    %818 = vmatprep.subr.mxu0 0.0
    %819 = vmatpush2.msra.mxu0 0.0
    %820 = vmatprep.subr.mxu0 0.0
    %821 = vmatpush2.msra.mxu0 0.0
    %822 = vmatprep.subr.mxu0 0.0
    %823 = vmatpush2.msra.mxu0 0.0
    %824 = vmatprep.subr.mxu0 0.0
    %825 = vmatpush2.msra.mxu0 0.0
    %826 = vmatprep.subr.mxu0 0.0
    %827 = vmatpush2.msra.mxu0 0.0
    %828 = vmatprep.mubr.f32.mxu0 0.0
    %829 = vmatmul.mubr.f32.gmra.mxu0 %v762
    %v830 = vpop.f32.mrf.mxu0
    %v831 = vadd.f32 0.0, %v830
    %v832 = vpop.f32.mrf.mxu0
    %833 = vdwg.mxu0
    %v834 = vadd.f32 %v754, %v831
    %v835 = vadd.f32 %v834, %v276
    %v836 = vsel %vm278, %v835, 0.0
    %837 = vadd.xlane.f32.xlu0 %v836
    %v838 = vpop.xlane.xlu0 %837
    %v839 = vmul.f32 %v838, %v282
    %v840 = vsub.f32 %v835, %v839
    %v841 = vmul.f32 %v840, %v840
    %v842 = vsel %vm278, %v841, 0.0
    %843 = vadd.xlane.f32.xlu0 %v842
    %v844 = vpop.xlane.xlu0 %843
    %v845 = vmul.f32 %v844, %v282
    %v846 = vadd.f32 %v845, 1e-05
    %v847 = vrsqrt.pop %v846
    %v848 = vmul.f32 %v840, %v847
    %v849 = vmul.f32 %v848, %v296
    %v850 = vadd.f32 %v849, %v301
    %v851 = vmax.f32 %v850, 0.0
    %v853 = vrot.slane %v851, 7
    %v855 = vsel %vm34, 0.0, %v853
    %v856 = vsel %vm34, %v853, 0.0
    %v857 = vld [vmem:[%s2] sm:$0xff]
    %v858 = vld [vmem:[%s2 + $0x8] sm:$0xff]
    %v859 = vld [vmem:[%s2 + $0x10] sm:$0xff]
    %v860 = vld [vmem:[%s2 + $0x18] sm:$0xff]
    %v861 = vld [vmem:[%s313] sm:$0xff]
    %v862 = vld [vmem:[%s313 + $0x8] sm:$0xff]
    %v863 = vld [vmem:[%s313 + $0x10] sm:$0xff]
    %v864 = vld [vmem:[%s313 + $0x18] sm:$0xff]
    %v867 = vrot.slane %v855, 1
    %v868 = vrot.slane %v856, 1
    %v869 = vsel %vm44, %v867, %v868
    %v870 = vsel %vm278, %v869, 0
    %872 = vmatprep.subr.mxu0 0.0
    %873 = vmatpush1.msra.mxu0 0.0
    %874 = vmatprep.subr.mxu0 0.0
    %875 = vmatpush1.msra.mxu0 0.0
    %876 = vmatprep.subr.mxu0 0.0
    %877 = vmatpush1.msra.mxu0 0.0
    %878 = vmatprep.subr.mxu0 0.0
    %879 = vmatpush1.msra.mxu0 0.0
    %880 = vmatprep.subr.mxu0 0.0
    %881 = vmatpush1.msra.mxu0 0.0
    %882 = vmatprep.subr.mxu0 0.0
    %883 = vmatpush1.msra.mxu0 0.0
    %884 = vmatprep.subr.mxu0 0.0
    %885 = vmatpush1.msra.mxu0 0.0
    %886 = vmatprep.subr.mxu0 0.0
    %887 = vmatpush1.msra.mxu0 0.0
    %888 = vmatprep.subr.mxu0 0.0
    %889 = vmatpush1.msra.mxu0 0.0
    %890 = vmatprep.subr.mxu0 0.0
    %891 = vmatpush1.msra.mxu0 0.0
    %892 = vmatprep.subr.mxu0 0.0
    %893 = vmatpush1.msra.mxu0 0.0
    %894 = vmatprep.subr.mxu0 0.0
    %895 = vmatpush1.msra.mxu0 0.0
    %896 = vmatprep.subr.mxu0 0.0
    %897 = vmatpush1.msra.mxu0 %v864
    %898 = vmatprep.subr.mxu0 0.0
    %899 = vmatpush1.msra.mxu0 %v863
    %900 = vmatprep.subr.mxu0 0.0
    %901 = vmatpush1.msra.mxu0 %v862
    %902 = vmatprep.subr.mxu0 0.0
    %903 = vmatpush1.msra.mxu0 %v861
    %904 = vmatprep.subr.mxu0 0.0
    %905 = vmatpush2.msra.mxu0 0.0
    %906 = vmatprep.subr.mxu0 0.0
    %907 = vmatpush2.msra.mxu0 0.0
    %908 = vmatprep.subr.mxu0 0.0
    %909 = vmatpush2.msra.mxu0 0.0
    %910 = vmatprep.subr.mxu0 0.0
    %911 = vmatpush2.msra.mxu0 0.0
    %912 = vmatprep.subr.mxu0 0.0
    %913 = vmatpush2.msra.mxu0 0.0
    %914 = vmatprep.subr.mxu0 0.0
    %915 = vmatpush2.msra.mxu0 0.0
    %916 = vmatprep.subr.mxu0 0.0
    %917 = vmatpush2.msra.mxu0 0.0
    %918 = vmatprep.subr.mxu0 0.0
    %919 = vmatpush2.msra.mxu0 0.0
    %920 = vmatprep.subr.mxu0 0.0
    %921 = vmatpush2.msra.mxu0 0.0
    %922 = vmatprep.subr.mxu0 0.0
    %923 = vmatpush2.msra.mxu0 0.0
    %924 = vmatprep.subr.mxu0 0.0
    %925 = vmatpush2.msra.mxu0 0.0
    %926 = vmatprep.subr.mxu0 0.0
    %927 = vmatpush2.msra.mxu0 0.0
    %928 = vmatprep.subr.mxu0 0.0
    %929 = vmatpush2.msra.mxu0 0.0
    %930 = vmatprep.subr.mxu0 0.0
    %931 = vmatpush2.msra.mxu0 0.0
    %932 = vmatprep.subr.mxu0 0.0
    %933 = vmatpush2.msra.mxu0 0.0
    %934 = vmatprep.subr.mxu0 0.0
    %935 = vmatpush2.msra.mxu0 0.0
    %936 = vmatprep.mubr.f32.mxu0 0.0
    %937 = vmatmul.mubr.f32.gmra.mxu0 %v870
    %v938 = vpop.f32.mrf.mxu0
    %v939 = vadd.f32 0.0, %v938
    %v940 = vpop.f32.mrf.mxu0
    %941 = vdwg.mxu0
    %v942 = vsel %vm278, %v855, 0
    %944 = vmatprep.subr.mxu0 0.0
    %945 = vmatpush1.msra.mxu0 0.0
    %946 = vmatprep.subr.mxu0 0.0
    %947 = vmatpush1.msra.mxu0 0.0
    %948 = vmatprep.subr.mxu0 0.0
    %949 = vmatpush1.msra.mxu0 0.0
    %950 = vmatprep.subr.mxu0 0.0
    %951 = vmatpush1.msra.mxu0 0.0
    %952 = vmatprep.subr.mxu0 0.0
    %953 = vmatpush1.msra.mxu0 0.0
    %954 = vmatprep.subr.mxu0 0.0
    %955 = vmatpush1.msra.mxu0 0.0
    %956 = vmatprep.subr.mxu0 0.0
    %957 = vmatpush1.msra.mxu0 0.0
    %958 = vmatprep.subr.mxu0 0.0
    %959 = vmatpush1.msra.mxu0 0.0
    %960 = vmatprep.subr.mxu0 0.0
    %961 = vmatpush1.msra.mxu0 0.0
    %962 = vmatprep.subr.mxu0 0.0
    %963 = vmatpush1.msra.mxu0 0.0
    %964 = vmatprep.subr.mxu0 0.0
    %965 = vmatpush1.msra.mxu0 0.0
    %966 = vmatprep.subr.mxu0 0.0
    %967 = vmatpush1.msra.mxu0 0.0
    %968 = vmatprep.subr.mxu0 0.0
    %969 = vmatpush1.msra.mxu0 %v860
    %970 = vmatprep.subr.mxu0 0.0
    %971 = vmatpush1.msra.mxu0 %v859
    %972 = vmatprep.subr.mxu0 0.0
    %973 = vmatpush1.msra.mxu0 %v858
    %974 = vmatprep.subr.mxu0 0.0
    %975 = vmatpush1.msra.mxu0 %v857
    %976 = vmatprep.subr.mxu0 0.0
    %977 = vmatpush2.msra.mxu0 0.0
    %978 = vmatprep.subr.mxu0 0.0
    %979 = vmatpush2.msra.mxu0 0.0
    %980 = vmatprep.subr.mxu0 0.0
    %981 = vmatpush2.msra.mxu0 0.0
    %982 = vmatprep.subr.mxu0 0.0
    %983 = vmatpush2.msra.mxu0 0.0
    %984 = vmatprep.subr.mxu0 0.0
    %985 = vmatpush2.msra.mxu0 0.0
    %986 = vmatprep.subr.mxu0 0.0
    %987 = vmatpush2.msra.mxu0 0.0
    %988 = vmatprep.subr.mxu0 0.0
    %989 = vmatpush2.msra.mxu0 0.0
    %990 = vmatprep.subr.mxu0 0.0
    %991 = vmatpush2.msra.mxu0 0.0
    %992 = vmatprep.subr.mxu0 0.0
    %993 = vmatpush2.msra.mxu0 0.0
    %994 = vmatprep.subr.mxu0 0.0
    %995 = vmatpush2.msra.mxu0 0.0
    %996 = vmatprep.subr.mxu0 0.0
    %997 = vmatpush2.msra.mxu0 0.0
    %998 = vmatprep.subr.mxu0 0.0
    %999 = vmatpush2.msra.mxu0 0.0
    %1000 = vmatprep.subr.mxu0 0.0
    %1001 = vmatpush2.msra.mxu0 0.0
    %1002 = vmatprep.subr.mxu0 0.0
    %1003 = vmatpush2.msra.mxu0 0.0
    %1004 = vmatprep.subr.mxu0 0.0
    %1005 = vmatpush2.msra.mxu0 0.0
    %1006 = vmatprep.subr.mxu0 0.0
    %1007 = vmatpush2.msra.mxu0 0.0
    %1008 = vmatprep.mubr.f32.mxu0 0.0
    %1009 = vmatmul.mubr.f32.gmra.mxu0 %v942
    %v1010 = vpop.f32.mrf.mxu0
    %v1011 = vadd.f32 %v939, %v1010
    %v1012 = vpop.f32.mrf.mxu0
    %1013 = vdwg.mxu0
    %v1014 = vld [vmem:[%s467] sm:$0xff]
    %v1015 = vld [vmem:[%s467 + $0x8] sm:$0xff]
    %v1016 = vld [vmem:[%s467 + $0x10] sm:$0xff]
    %v1017 = vld [vmem:[%s467 + $0x18] sm:$0xff]
    %v1018 = vrot.slane %v855, 2
    %v1019 = vrot.slane %v856, 2
    %v1020 = vsel %vm196, %v1018, %v1019
    %v1021 = vsel %vm278, %v1020, 0
    %1023 = vmatprep.subr.mxu0 0.0
    %1024 = vmatpush1.msra.mxu0 0.0
    %1025 = vmatprep.subr.mxu0 0.0
    %1026 = vmatpush1.msra.mxu0 0.0
    %1027 = vmatprep.subr.mxu0 0.0
    %1028 = vmatpush1.msra.mxu0 0.0
    %1029 = vmatprep.subr.mxu0 0.0
    %1030 = vmatpush1.msra.mxu0 0.0
    %1031 = vmatprep.subr.mxu0 0.0
    %1032 = vmatpush1.msra.mxu0 0.0
    %1033 = vmatprep.subr.mxu0 0.0
    %1034 = vmatpush1.msra.mxu0 0.0
    %1035 = vmatprep.subr.mxu0 0.0
    %1036 = vmatpush1.msra.mxu0 0.0
    %1037 = vmatprep.subr.mxu0 0.0
    %1038 = vmatpush1.msra.mxu0 0.0
    %1039 = vmatprep.subr.mxu0 0.0
    %1040 = vmatpush1.msra.mxu0 0.0
    %1041 = vmatprep.subr.mxu0 0.0
    %1042 = vmatpush1.msra.mxu0 0.0
    %1043 = vmatprep.subr.mxu0 0.0
    %1044 = vmatpush1.msra.mxu0 0.0
    %1045 = vmatprep.subr.mxu0 0.0
    %1046 = vmatpush1.msra.mxu0 0.0
    %1047 = vmatprep.subr.mxu0 0.0
    %1048 = vmatpush1.msra.mxu0 %v1017
    %1049 = vmatprep.subr.mxu0 0.0
    %1050 = vmatpush1.msra.mxu0 %v1016
    %1051 = vmatprep.subr.mxu0 0.0
    %1052 = vmatpush1.msra.mxu0 %v1015
    %1053 = vmatprep.subr.mxu0 0.0
    %1054 = vmatpush1.msra.mxu0 %v1014
    %1055 = vmatprep.subr.mxu0 0.0
    %1056 = vmatpush2.msra.mxu0 0.0
    %1057 = vmatprep.subr.mxu0 0.0
    %1058 = vmatpush2.msra.mxu0 0.0
    %1059 = vmatprep.subr.mxu0 0.0
    %1060 = vmatpush2.msra.mxu0 0.0
    %1061 = vmatprep.subr.mxu0 0.0
    %1062 = vmatpush2.msra.mxu0 0.0
    %1063 = vmatprep.subr.mxu0 0.0
    %1064 = vmatpush2.msra.mxu0 0.0
    %1065 = vmatprep.subr.mxu0 0.0
    %1066 = vmatpush2.msra.mxu0 0.0
    %1067 = vmatprep.subr.mxu0 0.0
    %1068 = vmatpush2.msra.mxu0 0.0
    %1069 = vmatprep.subr.mxu0 0.0
    %1070 = vmatpush2.msra.mxu0 0.0
    %1071 = vmatprep.subr.mxu0 0.0
    %1072 = vmatpush2.msra.mxu0 0.0
    %1073 = vmatprep.subr.mxu0 0.0
    %1074 = vmatpush2.msra.mxu0 0.0
    %1075 = vmatprep.subr.mxu0 0.0
    %1076 = vmatpush2.msra.mxu0 0.0
    %1077 = vmatprep.subr.mxu0 0.0
    %1078 = vmatpush2.msra.mxu0 0.0
    %1079 = vmatprep.subr.mxu0 0.0
    %1080 = vmatpush2.msra.mxu0 0.0
    %1081 = vmatprep.subr.mxu0 0.0
    %1082 = vmatpush2.msra.mxu0 0.0
    %1083 = vmatprep.subr.mxu0 0.0
    %1084 = vmatpush2.msra.mxu0 0.0
    %1085 = vmatprep.subr.mxu0 0.0
    %1086 = vmatpush2.msra.mxu0 0.0
    %1087 = vmatprep.mubr.f32.mxu0 0.0
    %1088 = vmatmul.mubr.f32.gmra.mxu0 %v1021
    %v1089 = vpop.f32.mrf.mxu0
    %v1090 = vadd.f32 0.0, %v1089
    %v1091 = vpop.f32.mrf.mxu0
    %1092 = vdwg.mxu0
    %v1093 = vadd.f32 %v1011, %v1090
    %v1094 = vadd.f32 %v1093, %v551
    %v1095 = vsel %vm278, %v1094, 0.0
    %1096 = vadd.xlane.f32.xlu0 %v1095
    %v1097 = vpop.xlane.xlu0 %1096
    %v1098 = vmul.f32 %v1097, %v282
    %v1099 = vsub.f32 %v1094, %v1098
    %v1100 = vmul.f32 %v1099, %v1099
    %v1101 = vsel %vm278, %v1100, 0.0
    %1102 = vadd.xlane.f32.xlu0 %v1101
    %v1103 = vpop.xlane.xlu0 %1102
    %v1104 = vmul.f32 %v1103, %v282
    %v1105 = vadd.f32 %v1104, 1e-05
    %v1106 = vrsqrt.pop %v1105
    %v1107 = vmul.f32 %v1099, %v1106
    %v1108 = vmul.f32 %v1107, %v569
    %v1109 = vadd.f32 %v1108, %v574
    %v1110 = vmax.f32 %v1109, 0.0
    %v1111 = vmul.f32 %v1110, %v580
    %v1112 = vsel %vm278, %v1111, 0.0
    %1113 = vadd.xlane.f32.xlu0 %v1112
    %v1114 = vpop.xlane.xlu0 %1113
    %v1115 = vadd.f32 %v1114, %v585
    %v1117 = vlaneseq
    %v1118 = vshrl.u32 %v1117, 7
    %v1119 = vsub.s32 %v589, %v1118
    %v1120 = vrot.slane %v1115, %v1119
    %1122 = vst.msk [vmem:[#allocation3 + $0x1] sm:$0x1] %vm595, %v1120
    // Predicated region
    $region22: #{_predict_stage.1} parent=1 // pred_check
      _
    $region23: #{_predict_stage.1} parent=1 // pred_check_branch
      %1124 = sbr.rel (0) target = $region25
    $region24: #{_predict_stage.1} parent=1 // pred_region
      %s1126 = ssub.s32 32, 32
      %1127 = vsyncadd [#allocation4], %s1126
      %s1129 = sshll.u32 [#allocation3], 4
      %s1130 = int_to_ptr.vmem [resolvable:$true] %s1129
      %1132 = dma.vmem_to_hbm [thread:$0]  %s1130, 32, %s5, [#allocation4]
    $region25: #{_predict_stage.1} parent=1 // pred_fallthru
      _
    // Predicated region
    $region26: #{_predict_stage.1} parent=1 // pred_check
      _
    $region27: #{_predict_stage.1} parent=1 // pred_check_branch
      %1134 = sbr.rel (0) target = $region29
    $region28: #{_predict_stage.1} parent=1 // pred_region
      %1135 = dma.done [#allocation4], 32
    $region29: #{_predict_stage.1} parent=1 // pred_fallthru
      _
    %1136 = vsyncpa [#allocation4], 1

</llo_original>
